<compile_context>
chip_gen: v7x
topology: tpu7x:2x2x1
jax: 0.10.0
libtpu: 0.0.40
codegen_flags: <defaults>
</compile_context>

<pallas_src>
import math

import jax
import jax.numpy as jnp
from jax.experimental import pallas as pl
from jax.experimental.pallas import tpu as pltpu

_SQRT2_INV = 1.0 / math.sqrt(2.0)
# Batched per-sample matvec: contract 'inner' (lhs dim 2 vs rhs dim 1),
# batch over dim 0.  lhs (B,1,inner) x rhs (B,inner,out) -> (B,1,out).
_BMM_DNUMS = (((2,), (1,)), ((0,), (0,)))


def _hebby_kernel(comb_ref, bl_ref, b_i2o_ref, b_sg_ref,
                  wl_hbm, w_i2o_hbm, w_sg_hbm,
                  out_ref, sg_ref,
                  wbuf, i2o_buf, sg_buf, sems):
    """Single-invocation kernel: manual double-buffered weight DMA + MXU bmm.

    comb_ref  : (B, 1, inner)        f32   VMEM  activations (input ++ hidden)
    bl_ref    : (L, 1, inner)        f32   VMEM  layer biases
    b_i2o_ref : (1, out)             f32   VMEM
    b_sg_ref  : (1, out)             f32   VMEM
    wl_hbm    : (L, B, inner, inner) bf16  HBM   per-batch layer weights (in,out)
    w_i2o_hbm : (B, inner, out)      bf16  HBM
    w_sg_hbm  : (B, inner, out)      bf16  HBM
    out_ref   : (B, out)             f32   VMEM
    sg_ref    : (B, out)             f32   VMEM
    wbuf      : (<=2, B, inner, inner) bf16 VMEM scratch (layer double buffer)
    i2o_buf   : (B, inner, out)      bf16  VMEM scratch
    sg_buf    : (B, inner, out)      bf16  VMEM scratch
    sems      : DMA semaphores (4,)  [layer slot0, layer slot1, i2o, sg]
    """
    num_layers = wl_hbm.shape[0]

    def layer_copy(l):
        slot = l & 1
        return pltpu.make_async_copy(wl_hbm.at[l], wbuf.at[slot], sems.at[slot])

    i2o_copy = pltpu.make_async_copy(w_i2o_hbm, i2o_buf, sems.at[2])
    sg_copy = pltpu.make_async_copy(w_sg_hbm, sg_buf, sems.at[3])

    # Prime the pipeline: layer 0 (and 1) weight copies in flight before any
    # compute; the tiny VMEM inputs (activations + biases) already landed.
    layer_copy(0).start()
    if num_layers > 1:
        layer_copy(1).start()

    # bf16 MXU operand; all accumulation / bias / GELU arithmetic stays f32.
    x = comb_ref[...].astype(jnp.bfloat16)                 # (B, 1, inner)

    for l in range(num_layers):                            # static unroll (L tiny)
        layer_copy(l).wait()
        if l == num_layers - 1:
            # Issue the head-weight copies so they stream behind the last
            # layer's compute (issue order == consumption order).
            i2o_copy.start()
            sg_copy.start()
        # Per-batch (1,inner)x(inner,inner) MXU matmul with f32 accumulation.
        y = jax.lax.dot_general(x, wbuf[l & 1], _BMM_DNUMS,
                                preferred_element_type=jnp.float32)  # (B,1,inner)
        y = y + bl_ref[l]                                   # (1,inner) broadcast
        # Exact (erf-based) GELU, matching torch.nn.functional.gelu default.
        h = 0.5 * y * (1.0 + jax.lax.erf(y * _SQRT2_INV))
        x = h.astype(jnp.bfloat16)                          # next MXU operand
        if l + 2 < num_layers:
            # Safe slot reuse: issued only after layer l's compute consumed it.
            layer_copy(l + 2).start()

    i2o_copy.wait()
    o = jax.lax.dot_general(x, i2o_buf[...], _BMM_DNUMS,
                            preferred_element_type=jnp.float32)       # (B,1,out)
    out_ref[...] = o[:, 0, :] + b_i2o_ref[...]

    sg_copy.wait()
    s = jax.lax.dot_general(x, sg_buf[...], _BMM_DNUMS,
                            preferred_element_type=jnp.float32)
    sg_ref[...] = s[:, 0, :] + b_sg_ref[...]


def hebby_rnn_forward(inp, hidden, wt_layers, b_layers, wt_i2o, b_i2o,
                      wt_sg, b_sg):
    """Pallas implementation of HebbyRNN.forward (no residual connection).

    Weights are expected in bf16 storage (halves the dominant HBM traffic);
    the cast below is a no-op when they already are.  Biases stay f32.
    Returns (output, new_hidden, self_grad).
    """
    B, input_size = inp.shape
    hidden_size = hidden.shape[1]
    inner = input_size + hidden_size
    out_dim = wt_i2o.shape[-1]
    num_layers = wt_layers.shape[0]

    # torch: combined = cat(input, hidden); kept as (B, 1, inner) so the kernel
    # feeds the batched MXU contraction without an in-kernel relayout.
    combined = jnp.concatenate(
        [inp.astype(jnp.float32), hidden.astype(jnp.float32)], axis=1
    ).reshape(B, 1, inner)

    wt_layers = wt_layers.astype(jnp.bfloat16)
    wt_i2o = wt_i2o.astype(jnp.bfloat16)
    wt_sg = wt_sg.astype(jnp.bfloat16)

    vmem = pl.BlockSpec(memory_space=pltpu.MemorySpace.VMEM)
    hbm = pl.BlockSpec(memory_space=pl.ANY)   # weights: manual DMA in-kernel

    n_slots = min(2, num_layers)
    out, self_grad = pl.pallas_call(
        _hebby_kernel,
        out_shape=(jax.ShapeDtypeStruct((B, out_dim), jnp.float32),
                   jax.ShapeDtypeStruct((B, out_dim), jnp.float32)),
        in_specs=[vmem, vmem, vmem, vmem, hbm, hbm, hbm],
        out_specs=(vmem, vmem),
        scratch_shapes=[
            pltpu.VMEM((n_slots, B, inner, inner), jnp.bfloat16),
            pltpu.VMEM((B, inner, out_dim), jnp.bfloat16),
            pltpu.VMEM((B, inner, out_dim), jnp.bfloat16),
            pltpu.SemaphoreType.DMA((4,)),
        ],
    )(combined,
      b_layers.astype(jnp.float32),
      b_i2o.astype(jnp.float32),
      b_sg.astype(jnp.float32),
      wt_layers, wt_i2o, wt_sg)

    # torch: hidden = i2h(combined); hidden = zeros_like(hidden); tanh(hidden)
    new_hidden = jnp.zeros_like(hidden)
    return out, new_hidden, self_grad


def _reference(inp, hidden, wt_layers, b_layers, wt_i2o, b_i2o, wt_sg, b_sg):
    """Plain-JAX reference mirroring the kernel math (bf16 MXU operands,
    f32 accumulation, f32 bias/GELU).  Note: this intentionally validates the
    bf16 kernel path, not a full-f32 torch module (which would differ ~1e-2)."""
    def q(v):  # mirror the kernel's bf16 operand quantization
        return v.astype(jnp.bfloat16).astype(jnp.float32)

    x = q(jnp.concatenate([inp, hidden], axis=1).astype(jnp.float32))
    for l in range(wt_layers.shape[0]):
        y = jnp.einsum('bi,bio->bo', x, wt_layers[l].astype(jnp.float32))
        y = y + b_layers[l, 0].astype(jnp.float32)
        x = q(jax.nn.gelu(y, approximate=False))
    out = jnp.einsum('bi,bio->bo', x, wt_i2o.astype(jnp.float32)) + b_i2o[0]
    sg = jnp.einsum('bi,bio->bo', x, wt_sg.astype(jnp.float32)) + b_sg[0]
    return out, jnp.zeros_like(hidden), sg


if __name__ == "__main__":
    # HebbyRNN(input_size=32, hidden_size=96, output_size=128, num_layers=2,
    #          update_rule='plastic_candidate', batch_size=8)
    B = 8
    input_size, hidden_size, output_size, num_layers = 32, 96, 128, 2
    inner = input_size + hidden_size  # 128

    key = jax.random.PRNGKey(0)
    ks = jax.random.split(key, 7)

    inp = jax.random.normal(ks[0], (B, input_size), jnp.float32)
    hidden = jnp.zeros((B, hidden_size), jnp.float32)     # HebbyRNN.initHidden

    # Deterministic synthetic parameters.  (The module's __init__ zeros the
    # candidate_weights; random values are used so the bmm hot path is really
    # exercised -- shapes match the module exactly, stored transposed, bf16.)
    scale = 0.1
    wt_layers = (scale * jax.random.normal(
        ks[1], (num_layers, B, inner, inner), jnp.float32)).astype(jnp.bfloat16)
    b_layers = scale * jax.random.normal(
        ks[2], (num_layers, 1, inner), jnp.float32)
    wt_i2o = (scale * jax.random.normal(
        ks[3], (B, inner, output_size), jnp.float32)).astype(jnp.bfloat16)
    b_i2o = scale * jax.random.normal(ks[4], (1, output_size), jnp.float32)
    wt_sg = (scale * jax.random.normal(
        ks[5], (B, inner, output_size), jnp.float32)).astype(jnp.bfloat16)
    b_sg = scale * jax.random.normal(ks[6], (1, output_size), jnp.float32)

    forward = jax.jit(hebby_rnn_forward)
    out, new_hidden, self_grad = forward(
        inp, hidden, wt_layers, b_layers, wt_i2o, b_i2o, wt_sg, b_sg)
    jax.block_until_ready((out, new_hidden, self_grad))

    ref_out, ref_hidden, ref_sg = _reference(
        inp, hidden, wt_layers, b_layers, wt_i2o, b_i2o, wt_sg, b_sg)

    assert out.shape == (B, output_size)
    assert new_hidden.shape == (B, hidden_size)
    assert self_grad.shape == (B, output_size)
    assert jnp.allclose(out, ref_out, atol=2e-3, rtol=2e-3)
    assert jnp.allclose(self_grad, ref_sg, atol=2e-3, rtol=2e-3)
    assert jnp.allclose(new_hidden, ref_hidden)

    print("KERNEL_OK")
</pallas_src>

<mosaic_0001>
module attributes {stable_mosaic.version = 11 : i64} {
  func.func @_hebby_kernel(%arg0: memref<8x1x128xf32, #tpu.memory_space<vmem>>, %arg1: memref<2x1x128xf32, #tpu.memory_space<vmem>>, %arg2: memref<1x128xf32, #tpu.memory_space<vmem>>, %arg3: memref<1x128xf32, #tpu.memory_space<vmem>>, %arg4: memref<2x8x128x128xbf16, #tpu.memory_space<any>>, %arg5: memref<8x128x128xbf16, #tpu.memory_space<any>>, %arg6: memref<8x128x128xbf16, #tpu.memory_space<any>>, %arg7: memref<8x128xf32, #tpu.memory_space<vmem>>, %arg8: memref<8x128xf32, #tpu.memory_space<vmem>>, %arg9: memref<2x8x128x128xbf16, #tpu.memory_space<vmem>>, %arg10: memref<8x128x128xbf16, #tpu.memory_space<vmem>>, %arg11: memref<8x128x128xbf16, #tpu.memory_space<vmem>>, %arg12: memref<4x!tpu.dma_semaphore, #tpu.memory_space<semaphore_mem>>) attributes {dimension_semantics = [], scalar_prefetch = 0 : i64, scratch_operands = 4 : i64, tpu.core_type = #tpu.core_type<tc>} {
    %c0_i32 = arith.constant 0 : i32
    %c0_i32_0 = arith.constant 0 : i32
    %c0_i32_1 = arith.constant 0 : i32
    %c0_i32_2 = arith.constant 0 : i32
    %c0_i32_3 = arith.constant 0 : i32
    %c0_i32_4 = arith.constant 0 : i32
    %0 = tpu.memref_slice %arg4[%c0_i32, %c0_i32_2, %c0_i32_3, %c0_i32_4] : memref<2x8x128x128xbf16, #tpu.memory_space<any>> -> memref<1x8x128x128xbf16, #tpu.memory_space<any>>
    %1 = tpu.memref_squeeze %0 : memref<1x8x128x128xbf16, #tpu.memory_space<any>> -> memref<8x128x128xbf16, #tpu.memory_space<any>>
    %c0_i32_5 = arith.constant 0 : i32
    %c0_i32_6 = arith.constant 0 : i32
    %c0_i32_7 = arith.constant 0 : i32
    %2 = tpu.memref_slice %arg9[%c0_i32_0, %c0_i32_5, %c0_i32_6, %c0_i32_7] : memref<2x8x128x128xbf16, #tpu.memory_space<vmem>> -> memref<1x8x128x128xbf16, #tpu.memory_space<vmem>>
    %3 = tpu.memref_squeeze %2 : memref<1x8x128x128xbf16, #tpu.memory_space<vmem>> -> memref<8x128x128xbf16, #tpu.memory_space<vmem>>
    %4 = tpu.memref_slice %arg12[%c0_i32_1] : memref<4x!tpu.dma_semaphore, #tpu.memory_space<semaphore_mem>> -> memref<1x!tpu.dma_semaphore, #tpu.memory_space<semaphore_mem>>
    %5 = tpu.memref_squeeze %4 : memref<1x!tpu.dma_semaphore, #tpu.memory_space<semaphore_mem>> -> memref<!tpu.dma_semaphore, #tpu.memory_space<semaphore_mem>>
    tpu.enqueue_dma source(%1 : memref<8x128x128xbf16, #tpu.memory_space<any>>) target(%3 : memref<8x128x128xbf16, #tpu.memory_space<vmem>>) target_semaphore(%5 : memref<!tpu.dma_semaphore, #tpu.memory_space<semaphore_mem>>)
    %c1_i32 = arith.constant 1 : i32
    %c1_i32_8 = arith.constant 1 : i32
    %c1_i32_9 = arith.constant 1 : i32
    %c0_i32_10 = arith.constant 0 : i32
    %c0_i32_11 = arith.constant 0 : i32
    %c0_i32_12 = arith.constant 0 : i32
    %6 = tpu.memref_slice %arg4[%c1_i32, %c0_i32_10, %c0_i32_11, %c0_i32_12] : memref<2x8x128x128xbf16, #tpu.memory_space<any>> -> memref<1x8x128x128xbf16, #tpu.memory_space<any>>
    %7 = tpu.memref_squeeze %6 : memref<1x8x128x128xbf16, #tpu.memory_space<any>> -> memref<8x128x128xbf16, #tpu.memory_space<any>>
    %c0_i32_13 = arith.constant 0 : i32
    %c0_i32_14 = arith.constant 0 : i32
    %c0_i32_15 = arith.constant 0 : i32
    %8 = tpu.memref_slice %arg9[%c1_i32_8, %c0_i32_13, %c0_i32_14, %c0_i32_15] : memref<2x8x128x128xbf16, #tpu.memory_space<vmem>> -> memref<1x8x128x128xbf16, #tpu.memory_space<vmem>>
    %9 = tpu.memref_squeeze %8 : memref<1x8x128x128xbf16, #tpu.memory_space<vmem>> -> memref<8x128x128xbf16, #tpu.memory_space<vmem>>
    %10 = tpu.memref_slice %arg12[%c1_i32_9] : memref<4x!tpu.dma_semaphore, #tpu.memory_space<semaphore_mem>> -> memref<1x!tpu.dma_semaphore, #tpu.memory_space<semaphore_mem>>
    %11 = tpu.memref_squeeze %10 : memref<1x!tpu.dma_semaphore, #tpu.memory_space<semaphore_mem>> -> memref<!tpu.dma_semaphore, #tpu.memory_space<semaphore_mem>>
    tpu.enqueue_dma source(%7 : memref<8x128x128xbf16, #tpu.memory_space<any>>) target(%9 : memref<8x128x128xbf16, #tpu.memory_space<vmem>>) target_semaphore(%11 : memref<!tpu.dma_semaphore, #tpu.memory_space<semaphore_mem>>)
    %c0 = arith.constant 0 : index
    %c0_16 = arith.constant 0 : index
    %c0_17 = arith.constant 0 : index
    %12 = vector.load %arg0[%c0, %c0_16, %c0_17] : memref<8x1x128xf32, #tpu.memory_space<vmem>>, vector<8x1x128xf32>
    %13 = arith.truncf %12 : vector<8x1x128xf32> to vector<8x1x128xbf16>
    %c0_i32_18 = arith.constant 0 : i32
    %c0_i32_19 = arith.constant 0 : i32
    %c0_i32_20 = arith.constant 0 : i32
    %c0_i32_21 = arith.constant 0 : i32
    %c0_i32_22 = arith.constant 0 : i32
    %c0_i32_23 = arith.constant 0 : i32
    %14 = tpu.memref_slice %arg4[%c0_i32_18, %c0_i32_21, %c0_i32_22, %c0_i32_23] : memref<2x8x128x128xbf16, #tpu.memory_space<any>> -> memref<1x8x128x128xbf16, #tpu.memory_space<any>>
    %15 = tpu.memref_squeeze %14 : memref<1x8x128x128xbf16, #tpu.memory_space<any>> -> memref<8x128x128xbf16, #tpu.memory_space<any>>
    %c0_i32_24 = arith.constant 0 : i32
    %c0_i32_25 = arith.constant 0 : i32
    %c0_i32_26 = arith.constant 0 : i32
    %16 = tpu.memref_slice %arg9[%c0_i32_19, %c0_i32_24, %c0_i32_25, %c0_i32_26] : memref<2x8x128x128xbf16, #tpu.memory_space<vmem>> -> memref<1x8x128x128xbf16, #tpu.memory_space<vmem>>
    %17 = tpu.memref_squeeze %16 : memref<1x8x128x128xbf16, #tpu.memory_space<vmem>> -> memref<8x128x128xbf16, #tpu.memory_space<vmem>>
    %18 = tpu.memref_slice %arg12[%c0_i32_20] : memref<4x!tpu.dma_semaphore, #tpu.memory_space<semaphore_mem>> -> memref<1x!tpu.dma_semaphore, #tpu.memory_space<semaphore_mem>>
    %19 = tpu.memref_squeeze %18 : memref<1x!tpu.dma_semaphore, #tpu.memory_space<semaphore_mem>> -> memref<!tpu.dma_semaphore, #tpu.memory_space<semaphore_mem>>
    tpu.wait_dma2 semaphore(%19 : memref<!tpu.dma_semaphore, #tpu.memory_space<semaphore_mem>>) src(%15 : memref<8x128x128xbf16, #tpu.memory_space<any>>) dst(%17 : memref<8x128x128xbf16, #tpu.memory_space<vmem>>)
    %c0_27 = arith.constant 0 : index
    %c0_28 = arith.constant 0 : index
    %c0_29 = arith.constant 0 : index
    %c0_30 = arith.constant 0 : index
    %20 = vector.load %arg9[%c0_27, %c0_28, %c0_29, %c0_30] : memref<2x8x128x128xbf16, #tpu.memory_space<vmem>>, vector<1x8x128x128xbf16>
    %21 = vector.shape_cast %20 : vector<1x8x128x128xbf16> to vector<8x128x128xbf16>
    %cst = arith.constant dense<0.000000e+00> : vector<8x1x128xf32>
    %22 = tpu.matmul %13, %21, %cst {dimension_numbers = #tpu.dot_dimension_numbers<[2], [1], [1], [2], [0, 0, 0, 1, 1, 2], [0], [0]>} : vector<8x1x128xbf16>, vector<8x128x128xbf16>, vector<8x1x128xf32> -> vector<8x1x128xf32>
    %c0_31 = arith.constant 0 : index
    %c0_32 = arith.constant 0 : index
    %c0_33 = arith.constant 0 : index
    %23 = vector.load %arg1[%c0_31, %c0_32, %c0_33] : memref<2x1x128xf32, #tpu.memory_space<vmem>>, vector<1x1x128xf32>
    %24 = vector.shape_cast %23 : vector<1x1x128xf32> to vector<1x128xf32>
    %25 = vector.shape_cast %24 : vector<1x128xf32> to vector<1x1x128xf32>
    %26 = vector.broadcast %25 : vector<1x1x128xf32> to vector<8x1x128xf32>
    %27 = arith.addf %22, %26 : vector<8x1x128xf32>
    %cst_34 = arith.constant 5.000000e-01 : f32
    %28 = vector.broadcast %cst_34 : f32 to vector<8x1x128xf32>
    %29 = arith.mulf %28, %27 : vector<8x1x128xf32>
    %cst_35 = arith.constant 0.707106769 : f32
    %30 = vector.broadcast %cst_35 : f32 to vector<8x1x128xf32>
    %31 = arith.mulf %27, %30 : vector<8x1x128xf32>
    %32 = math.erf %31 : vector<8x1x128xf32>
    %cst_36 = arith.constant 1.000000e+00 : f32
    %33 = vector.broadcast %cst_36 : f32 to vector<8x1x128xf32>
    %34 = arith.addf %33, %32 : vector<8x1x128xf32>
    %35 = arith.mulf %29, %34 : vector<8x1x128xf32>
    %36 = arith.truncf %35 : vector<8x1x128xf32> to vector<8x1x128xbf16>
    %c1_i32_37 = arith.constant 1 : i32
    %c1_i32_38 = arith.constant 1 : i32
    %c1_i32_39 = arith.constant 1 : i32
    %c0_i32_40 = arith.constant 0 : i32
    %c0_i32_41 = arith.constant 0 : i32
    %c0_i32_42 = arith.constant 0 : i32
    %37 = tpu.memref_slice %arg4[%c1_i32_37, %c0_i32_40, %c0_i32_41, %c0_i32_42] : memref<2x8x128x128xbf16, #tpu.memory_space<any>> -> memref<1x8x128x128xbf16, #tpu.memory_space<any>>
    %38 = tpu.memref_squeeze %37 : memref<1x8x128x128xbf16, #tpu.memory_space<any>> -> memref<8x128x128xbf16, #tpu.memory_space<any>>
    %c0_i32_43 = arith.constant 0 : i32
    %c0_i32_44 = arith.constant 0 : i32
    %c0_i32_45 = arith.constant 0 : i32
    %39 = tpu.memref_slice %arg9[%c1_i32_38, %c0_i32_43, %c0_i32_44, %c0_i32_45] : memref<2x8x128x128xbf16, #tpu.memory_space<vmem>> -> memref<1x8x128x128xbf16, #tpu.memory_space<vmem>>
    %40 = tpu.memref_squeeze %39 : memref<1x8x128x128xbf16, #tpu.memory_space<vmem>> -> memref<8x128x128xbf16, #tpu.memory_space<vmem>>
    %41 = tpu.memref_slice %arg12[%c1_i32_39] : memref<4x!tpu.dma_semaphore, #tpu.memory_space<semaphore_mem>> -> memref<1x!tpu.dma_semaphore, #tpu.memory_space<semaphore_mem>>
    %42 = tpu.memref_squeeze %41 : memref<1x!tpu.dma_semaphore, #tpu.memory_space<semaphore_mem>> -> memref<!tpu.dma_semaphore, #tpu.memory_space<semaphore_mem>>
    tpu.wait_dma2 semaphore(%42 : memref<!tpu.dma_semaphore, #tpu.memory_space<semaphore_mem>>) src(%38 : memref<8x128x128xbf16, #tpu.memory_space<any>>) dst(%40 : memref<8x128x128xbf16, #tpu.memory_space<vmem>>)
    %c2_i32 = arith.constant 2 : i32
    %43 = tpu.memref_slice %arg12[%c2_i32] : memref<4x!tpu.dma_semaphore, #tpu.memory_space<semaphore_mem>> -> memref<1x!tpu.dma_semaphore, #tpu.memory_space<semaphore_mem>>
    %44 = tpu.memref_squeeze %43 : memref<1x!tpu.dma_semaphore, #tpu.memory_space<semaphore_mem>> -> memref<!tpu.dma_semaphore, #tpu.memory_space<semaphore_mem>>
    tpu.enqueue_dma source(%arg5 : memref<8x128x128xbf16, #tpu.memory_space<any>>) target(%arg10 : memref<8x128x128xbf16, #tpu.memory_space<vmem>>) target_semaphore(%44 : memref<!tpu.dma_semaphore, #tpu.memory_space<semaphore_mem>>)
    %c3_i32 = arith.constant 3 : i32
    %45 = tpu.memref_slice %arg12[%c3_i32] : memref<4x!tpu.dma_semaphore, #tpu.memory_space<semaphore_mem>> -> memref<1x!tpu.dma_semaphore, #tpu.memory_space<semaphore_mem>>
    %46 = tpu.memref_squeeze %45 : memref<1x!tpu.dma_semaphore, #tpu.memory_space<semaphore_mem>> -> memref<!tpu.dma_semaphore, #tpu.memory_space<semaphore_mem>>
    tpu.enqueue_dma source(%arg6 : memref<8x128x128xbf16, #tpu.memory_space<any>>) target(%arg11 : memref<8x128x128xbf16, #tpu.memory_space<vmem>>) target_semaphore(%46 : memref<!tpu.dma_semaphore, #tpu.memory_space<semaphore_mem>>)
    %c1 = arith.constant 1 : index
    %c0_46 = arith.constant 0 : index
    %c0_47 = arith.constant 0 : index
    %c0_48 = arith.constant 0 : index
    %47 = vector.load %arg9[%c1, %c0_46, %c0_47, %c0_48] : memref<2x8x128x128xbf16, #tpu.memory_space<vmem>>, vector<1x8x128x128xbf16>
    %48 = vector.shape_cast %47 : vector<1x8x128x128xbf16> to vector<8x128x128xbf16>
    %cst_49 = arith.constant dense<0.000000e+00> : vector<8x1x128xf32>
    %49 = tpu.matmul %36, %48, %cst_49 {dimension_numbers = #tpu.dot_dimension_numbers<[2], [1], [1], [2], [0, 0, 0, 1, 1, 2], [0], [0]>} : vector<8x1x128xbf16>, vector<8x128x128xbf16>, vector<8x1x128xf32> -> vector<8x1x128xf32>
    %c1_50 = arith.constant 1 : index
    %c0_51 = arith.constant 0 : index
    %c0_52 = arith.constant 0 : index
    %50 = vector.load %arg1[%c1_50, %c0_51, %c0_52] : memref<2x1x128xf32, #tpu.memory_space<vmem>>, vector<1x1x128xf32>
    %51 = vector.shape_cast %50 : vector<1x1x128xf32> to vector<1x128xf32>
    %52 = vector.shape_cast %51 : vector<1x128xf32> to vector<1x1x128xf32>
    %53 = vector.broadcast %52 : vector<1x1x128xf32> to vector<8x1x128xf32>
    %54 = arith.addf %49, %53 : vector<8x1x128xf32>
    %cst_53 = arith.constant 5.000000e-01 : f32
    %55 = vector.broadcast %cst_53 : f32 to vector<8x1x128xf32>
    %56 = arith.mulf %55, %54 : vector<8x1x128xf32>
    %cst_54 = arith.constant 0.707106769 : f32
    %57 = vector.broadcast %cst_54 : f32 to vector<8x1x128xf32>
    %58 = arith.mulf %54, %57 : vector<8x1x128xf32>
    %59 = math.erf %58 : vector<8x1x128xf32>
    %cst_55 = arith.constant 1.000000e+00 : f32
    %60 = vector.broadcast %cst_55 : f32 to vector<8x1x128xf32>
    %61 = arith.addf %60, %59 : vector<8x1x128xf32>
    %62 = arith.mulf %56, %61 : vector<8x1x128xf32>
    %63 = arith.truncf %62 : vector<8x1x128xf32> to vector<8x1x128xbf16>
    %c2_i32_56 = arith.constant 2 : i32
    %64 = tpu.memref_slice %arg12[%c2_i32_56] : memref<4x!tpu.dma_semaphore, #tpu.memory_space<semaphore_mem>> -> memref<1x!tpu.dma_semaphore, #tpu.memory_space<semaphore_mem>>
    %65 = tpu.memref_squeeze %64 : memref<1x!tpu.dma_semaphore, #tpu.memory_space<semaphore_mem>> -> memref<!tpu.dma_semaphore, #tpu.memory_space<semaphore_mem>>
    tpu.wait_dma2 semaphore(%65 : memref<!tpu.dma_semaphore, #tpu.memory_space<semaphore_mem>>) src(%arg5 : memref<8x128x128xbf16, #tpu.memory_space<any>>) dst(%arg10 : memref<8x128x128xbf16, #tpu.memory_space<vmem>>)
    %c0_57 = arith.constant 0 : index
    %c0_58 = arith.constant 0 : index
    %c0_59 = arith.constant 0 : index
    %66 = vector.load %arg10[%c0_57, %c0_58, %c0_59] : memref<8x128x128xbf16, #tpu.memory_space<vmem>>, vector<8x128x128xbf16>
    %cst_60 = arith.constant dense<0.000000e+00> : vector<8x1x128xf32>
    %67 = tpu.matmul %63, %66, %cst_60 {dimension_numbers = #tpu.dot_dimension_numbers<[2], [1], [1], [2], [0, 0, 0, 1, 1, 2], [0], [0]>} : vector<8x1x128xbf16>, vector<8x128x128xbf16>, vector<8x1x128xf32> -> vector<8x1x128xf32>
    %68 = vector.shape_cast %67 : vector<8x1x128xf32> to vector<8x128xf32>
    %c0_61 = arith.constant 0 : index
    %c0_62 = arith.constant 0 : index
    %69 = vector.load %arg2[%c0_61, %c0_62] : memref<1x128xf32, #tpu.memory_space<vmem>>, vector<1x128xf32>
    %70 = vector.broadcast %69 : vector<1x128xf32> to vector<8x128xf32>
    %71 = arith.addf %68, %70 : vector<8x128xf32>
    %c0_63 = arith.constant 0 : index
    %c0_64 = arith.constant 0 : index
    %72 = vector.load %arg7[%c0_63, %c0_64] : memref<8x128xf32, #tpu.memory_space<vmem>>, vector<8x128xf32>
    tpu.vector_store %arg7[%c0_63, %c0_64], %71 {strides = array<i32>} : memref<8x128xf32, #tpu.memory_space<vmem>>, vector<8x128xf32>,
    %c3_i32_65 = arith.constant 3 : i32
    %73 = tpu.memref_slice %arg12[%c3_i32_65] : memref<4x!tpu.dma_semaphore, #tpu.memory_space<semaphore_mem>> -> memref<1x!tpu.dma_semaphore, #tpu.memory_space<semaphore_mem>>
    %74 = tpu.memref_squeeze %73 : memref<1x!tpu.dma_semaphore, #tpu.memory_space<semaphore_mem>> -> memref<!tpu.dma_semaphore, #tpu.memory_space<semaphore_mem>>
    tpu.wait_dma2 semaphore(%74 : memref<!tpu.dma_semaphore, #tpu.memory_space<semaphore_mem>>) src(%arg6 : memref<8x128x128xbf16, #tpu.memory_space<any>>) dst(%arg11 : memref<8x128x128xbf16, #tpu.memory_space<vmem>>)
    %c0_66 = arith.constant 0 : index
    %c0_67 = arith.constant 0 : index
    %c0_68 = arith.constant 0 : index
    %75 = vector.load %arg11[%c0_66, %c0_67, %c0_68] : memref<8x128x128xbf16, #tpu.memory_space<vmem>>, vector<8x128x128xbf16>
    %cst_69 = arith.constant dense<0.000000e+00> : vector<8x1x128xf32>
    %76 = tpu.matmul %63, %75, %cst_69 {dimension_numbers = #tpu.dot_dimension_numbers<[2], [1], [1], [2], [0, 0, 0, 1, 1, 2], [0], [0]>} : vector<8x1x128xbf16>, vector<8x128x128xbf16>, vector<8x1x128xf32> -> vector<8x1x128xf32>
    %77 = vector.shape_cast %76 : vector<8x1x128xf32> to vector<8x128xf32>
    %c0_70 = arith.constant 0 : index
    %c0_71 = arith.constant 0 : index
    %78 = vector.load %arg3[%c0_70, %c0_71] : memref<1x128xf32, #tpu.memory_space<vmem>>, vector<1x128xf32>
    %79 = vector.broadcast %78 : vector<1x128xf32> to vector<8x128xf32>
    %80 = arith.addf %77, %79 : vector<8x128xf32>
    %c0_72 = arith.constant 0 : index
    %c0_73 = arith.constant 0 : index
    %81 = vector.load %arg8[%c0_72, %c0_73] : memref<8x128xf32, #tpu.memory_space<vmem>>, vector<8x128xf32>
    tpu.vector_store %arg8[%c0_72, %c0_73], %80 {strides = array<i32>} : memref<8x128xf32, #tpu.memory_space<vmem>>, vector<8x128xf32>,
    return
  }
}

</mosaic_0001>

<llo_original>
// kernel: hebby_rnn_forward.1
$region0: #{hebby_rnn_forward.1}
  #allocation0 [shape = 'u32[]', space=smem, size = 0x4, offset = 0x4, fixed_abs, tag = 'smem constant byte address 0x4 - core index']
  #allocation1 [shape = 'u32[144,128]{1,0:T(1,128)}', space=vmem, size = 0x12000, scoped, tag = 'internal scratch']
  #allocation2 [shape = 'bf16[2,8,128,128]{3,2,1,0:T(16,128)(2,1)}', space=vmem, size = 0x80000, scoped, tag = 'scratch operand']
  #allocation3 [shape = 'bf16[8,128,128]{2,1,0:T(16,128)(2,1)}', space=vmem, size = 0x40000, scoped, tag = 'scratch operand']
  #allocation4 [shape = 'bf16[8,128,128]{2,1,0:T(16,128)(2,1)}', space=vmem, size = 0x40000, scoped, tag = 'scratch operand']
  #allocation5 [shape = 's32[4]{0}', space=sflag, size = 0x10, scoped, tag = 'scratch operand']
  #allocation10 [shape = 's32[]', space=sflag, size = 0x4, offset = 0, fixed_abs, tag = 'sflag constant byte address 0x0 - dummy sync flag']
  #allocation11 [shape = 's32[]', space=sflag, size = 0x4, offset = 0, fixed_abs, tag = 'sflag constant byte address 0x0 - dummy sync flag']
  #allocation12 [shape = 'u32[]', space=smem, size = 0x4, offset = 0x44, fixed_abs, tag = 'smem constant byte address 0x44 - assertion arg 0']
  #allocation13 [shape = 'u32[]', space=smem, size = 0x4, offset = 0x48, fixed_abs, tag = 'smem constant byte address 0x48 - assertion arg 1']
  #allocation14 [shape = 's32[]', space=sflag, size = 0x4, offset = 0, fixed_abs, tag = 'sflag constant byte address 0x0 - dummy sync flag']
  #allocation15 [shape = 's32[]', space=sflag, size = 0x4, offset = 0, fixed_abs, tag = 'sflag constant byte address 0x0 - dummy sync flag']
  #allocation16 [shape = 's32[]', space=sflag, size = 0x4, offset = 0, fixed_abs, tag = 'sflag constant byte address 0x0 - dummy sync flag']
  #allocation17 [shape = 's32[]', space=sflag, size = 0x4, offset = 0, fixed_abs, tag = 'sflag constant byte address 0x0 - dummy sync flag']
  #allocation18 [shape = 's32[]', space=sflag, size = 0x4, offset = 0, fixed_abs, tag = 'sflag constant byte address 0x0 - dummy sync flag']
  #allocation19 [shape = 's32[]', space=sflag, size = 0x4, offset = 0, fixed_abs, tag = 'sflag constant byte address 0x0 - dummy sync flag']
  %s0 = inlined_call_operand.vmem [shape: f32[8,1,128], index: 0, kind: input, shape index: {}]
  %s1 = inlined_call_operand.vmem [shape: f32[2,1,128], index: 1, kind: input, shape index: {}]
  %s2 = inlined_call_operand.vmem [shape: f32[1,128], index: 2, kind: input, shape index: {}]
  %s3 = inlined_call_operand.vmem [shape: f32[1,128], index: 3, kind: input, shape index: {}]
  %s4 = inlined_call_operand.hbm [shape: bf16[2,8,128,128], index: 4, kind: input, shape index: {}]
  %s5 = inlined_call_operand.hbm [shape: bf16[8,128,128], index: 5, kind: input, shape index: {}]
  %s6 = inlined_call_operand.hbm [shape: bf16[8,128,128], index: 6, kind: input, shape index: {}]
  %s7 = inlined_call_operand.hbm [shape: f32[8,128], index: 7, kind: output, shape index: {0}]
  %s8 = inlined_call_operand.hbm [shape: f32[8,128], index: 8, kind: output, shape index: {1}]
  %9 = xla_tuple %s7, %s8
  %s10 = sld [smem:[#allocation0]]
  $region50: #{hebby_rnn_forward.1} parent=0
    _
  %s12 = ssub.s32 1, %s10
  %s13 = scalar_select 0, %s12, %s10
  $region1: #{hebby_rnn_forward.1} parent=0
    #allocation6 [shape = 'u8[4096]{0}', space=vmem, size = 0x1000, scoped, tag = 'output window, operand 0, single buffered']
    #allocation7 [shape = 's32[1]{0}', space=sflag, size = 0x4, scoped, tag = 'scoped memory for hebby_rnn_forward.1']
    #allocation8 [shape = 'u8[4096]{0}', space=vmem, size = 0x1000, scoped, tag = 'output window, operand 1, single buffered']
    #allocation9 [shape = 's32[1]{0}', space=sflag, size = 0x4, scoped, tag = 'scoped memory for hebby_rnn_forward.1']
    %14 = vsyncpa [#allocation7], 0
    %15 = vsyncpa [#allocation9], 0
    // Predicated region
    $region2: #{hebby_rnn_forward.1} parent=1 // pred_check
      _
    $region3: #{hebby_rnn_forward.1} parent=1 // pred_check_branch
      %17 = sbr.rel (0) target = $region5
    $region4: #{hebby_rnn_forward.1} parent=1 // pred_region
      _
    $region5: #{hebby_rnn_forward.1} parent=1 // pred_fallthru
      _
    // Predicated region
    $region6: #{hebby_rnn_forward.1} parent=1 // pred_check
      _
    $region7: #{hebby_rnn_forward.1} parent=1 // pred_check_branch
      %19 = sbr.rel (0) target = $region9
    $region8: #{hebby_rnn_forward.1} parent=1 // pred_region
      _
    $region9: #{hebby_rnn_forward.1} parent=1 // pred_fallthru
      _
    // Predicated region
    $region10: #{hebby_rnn_forward.1} parent=1 // pred_check
      _
    $region11: #{hebby_rnn_forward.1} parent=1 // pred_check_branch
      %21 = sbr.rel (0) target = $region13
    $region12: #{hebby_rnn_forward.1} parent=1 // pred_region
      _
    $region13: #{hebby_rnn_forward.1} parent=1 // pred_fallthru
      _
    // Predicated region
    $region14: #{hebby_rnn_forward.1} parent=1 // pred_check
      _
    $region15: #{hebby_rnn_forward.1} parent=1 // pred_check_branch
      %23 = sbr.rel (0) target = $region17
    $region16: #{hebby_rnn_forward.1} parent=1 // pred_region
      _
    $region17: #{hebby_rnn_forward.1} parent=1 // pred_fallthru
      _
    // Predicated region
    $region18: #{hebby_rnn_forward.1} parent=1 // pred_check
      _
    $region19: #{hebby_rnn_forward.1} parent=1 // pred_check_branch
      %26 = sbr.rel target = $region21
    $region20: #{hebby_rnn_forward.1} parent=1 // pred_region
      %27 = sst [smem:[#allocation12]] [#allocation11]
      %28 = sst [smem:[#allocation13]] [#allocation10]
    $region21: #{hebby_rnn_forward.1} parent=1 // pred_fallthru
      _
    %30 = shalt.err (0)
    %s32 = sshll.u32 [#allocation2], 4
    %s33 = int_to_ptr.vmem [resolvable:$true] %s32
    %35 = dma.hbm_to_vmem [thread:$0]  %s4, 8192, %s33, [#allocation5]
    %s36 = scalar_lea.hbm %s4, 8192
    %s37 = scalar_lea.vmem [#allocation2], 512
    %s38 = scalar_lea.sflag [#allocation5], 1
    // Predicated region
    $region22: #{hebby_rnn_forward.1} parent=1 // pred_check
      _
    $region23: #{hebby_rnn_forward.1} parent=1 // pred_check_branch
      %40 = sbr.rel target = $region25
    $region24: #{hebby_rnn_forward.1} parent=1 // pred_region
      %41 = sst [smem:[#allocation12]] [#allocation15]
      %42 = sst [smem:[#allocation13]] [#allocation14]
    $region25: #{hebby_rnn_forward.1} parent=1 // pred_fallthru
      _
    %44 = shalt.err (0)
    %s46 = sshll.u32 %s37, 4
    %s47 = int_to_ptr.vmem [resolvable:$true] %s46
    %49 = dma.hbm_to_vmem [thread:$0]  %s36, 8192, %s47, %s38
    %v50 = vld [vmem:[%s0] sm:$0x1]
    %v51 = vld [vmem:[%s0 + $0x1] sm:$0x1]
    %v52 = vld [vmem:[%s0 + $0x2] sm:$0x1]
    %v53 = vld [vmem:[%s0 + $0x3] sm:$0x1]
    %v54 = vld [vmem:[%s0 + $0x4] sm:$0x1]
    %v55 = vld [vmem:[%s0 + $0x5] sm:$0x1]
    %v56 = vld [vmem:[%s0 + $0x6] sm:$0x1]
    %v57 = vld [vmem:[%s0 + $0x7] sm:$0x1]
    %v58 = vpack.c.bf16 %v50, %v50
    %v59 = vpack.c.bf16 %v51, %v51
    %v60 = vpack.c.bf16 %v52, %v52
    %v61 = vpack.c.bf16 %v53, %v53
    %v62 = vpack.c.bf16 %v54, %v54
    %v63 = vpack.c.bf16 %v55, %v55
    %v64 = vpack.c.bf16 %v56, %v56
    %v65 = vpack.c.bf16 %v57, %v57
    %s66 = smul.u32 4, 8
    %s67 = smul.u32 %s66, 16
    %s68 = smul.u32 %s67, 1
    %s69 = sshll.u32 %s68, 4
    %70 = dma.done [#allocation5], %s69
    %v71 = vld [vmem:[#allocation2] sm:$0xff]
    %v72 = vld [vmem:[#allocation2 + $0x8] sm:$0xff]
    %v73 = vld [vmem:[#allocation2 + $0x10] sm:$0xff]
    %v74 = vld [vmem:[#allocation2 + $0x18] sm:$0xff]
    %v75 = vld [vmem:[#allocation2 + $0x20] sm:$0xff]
    %v76 = vld [vmem:[#allocation2 + $0x28] sm:$0xff]
    %v77 = vld [vmem:[#allocation2 + $0x30] sm:$0xff]
    %v78 = vld [vmem:[#allocation2 + $0x38] sm:$0xff]
    %v79 = vld [vmem:[#allocation2 + $0x40] sm:$0xff]
    %v80 = vld [vmem:[#allocation2 + $0x48] sm:$0xff]
    %v81 = vld [vmem:[#allocation2 + $0x50] sm:$0xff]
    %v82 = vld [vmem:[#allocation2 + $0x58] sm:$0xff]
    %v83 = vld [vmem:[#allocation2 + $0x60] sm:$0xff]
    %v84 = vld [vmem:[#allocation2 + $0x68] sm:$0xff]
    %v85 = vld [vmem:[#allocation2 + $0x70] sm:$0xff]
    %v86 = vld [vmem:[#allocation2 + $0x78] sm:$0xff]
    %v87 = vld [vmem:[#allocation2 + $0x80] sm:$0xff]
    %v88 = vld [vmem:[#allocation2 + $0x88] sm:$0xff]
    %v89 = vld [vmem:[#allocation2 + $0x90] sm:$0xff]
    %v90 = vld [vmem:[#allocation2 + $0x98] sm:$0xff]
    %v91 = vld [vmem:[#allocation2 + $0xa0] sm:$0xff]
    %v92 = vld [vmem:[#allocation2 + $0xa8] sm:$0xff]
    %v93 = vld [vmem:[#allocation2 + $0xb0] sm:$0xff]
    %v94 = vld [vmem:[#allocation2 + $0xb8] sm:$0xff]
    %v95 = vld [vmem:[#allocation2 + $0xc0] sm:$0xff]
    %v96 = vld [vmem:[#allocation2 + $0xc8] sm:$0xff]
    %v97 = vld [vmem:[#allocation2 + $0xd0] sm:$0xff]
    %v98 = vld [vmem:[#allocation2 + $0xd8] sm:$0xff]
    %v99 = vld [vmem:[#allocation2 + $0xe0] sm:$0xff]
    %v100 = vld [vmem:[#allocation2 + $0xe8] sm:$0xff]
    %v101 = vld [vmem:[#allocation2 + $0xf0] sm:$0xff]
    %v102 = vld [vmem:[#allocation2 + $0xf8] sm:$0xff]
    %v103 = vld [vmem:[#allocation2 + $0x100] sm:$0xff]
    %v104 = vld [vmem:[#allocation2 + $0x108] sm:$0xff]
    %v105 = vld [vmem:[#allocation2 + $0x110] sm:$0xff]
    %v106 = vld [vmem:[#allocation2 + $0x118] sm:$0xff]
    %v107 = vld [vmem:[#allocation2 + $0x120] sm:$0xff]
    %v108 = vld [vmem:[#allocation2 + $0x128] sm:$0xff]
    %v109 = vld [vmem:[#allocation2 + $0x130] sm:$0xff]
    %v110 = vld [vmem:[#allocation2 + $0x138] sm:$0xff]
    %v111 = vld [vmem:[#allocation2 + $0x140] sm:$0xff]
    %v112 = vld [vmem:[#allocation2 + $0x148] sm:$0xff]
    %v113 = vld [vmem:[#allocation2 + $0x150] sm:$0xff]
    %v114 = vld [vmem:[#allocation2 + $0x158] sm:$0xff]
    %v115 = vld [vmem:[#allocation2 + $0x160] sm:$0xff]
    %v116 = vld [vmem:[#allocation2 + $0x168] sm:$0xff]
    %v117 = vld [vmem:[#allocation2 + $0x170] sm:$0xff]
    %v118 = vld [vmem:[#allocation2 + $0x178] sm:$0xff]
    %v119 = vld [vmem:[#allocation2 + $0x180] sm:$0xff]
    %v120 = vld [vmem:[#allocation2 + $0x188] sm:$0xff]
    %v121 = vld [vmem:[#allocation2 + $0x190] sm:$0xff]
    %v122 = vld [vmem:[#allocation2 + $0x198] sm:$0xff]
    %v123 = vld [vmem:[#allocation2 + $0x1a0] sm:$0xff]
    %v124 = vld [vmem:[#allocation2 + $0x1a8] sm:$0xff]
    %v125 = vld [vmem:[#allocation2 + $0x1b0] sm:$0xff]
    %v126 = vld [vmem:[#allocation2 + $0x1b8] sm:$0xff]
    %v127 = vld [vmem:[#allocation2 + $0x1c0] sm:$0xff]
    %v128 = vld [vmem:[#allocation2 + $0x1c8] sm:$0xff]
    %v129 = vld [vmem:[#allocation2 + $0x1d0] sm:$0xff]
    %v130 = vld [vmem:[#allocation2 + $0x1d8] sm:$0xff]
    %v131 = vld [vmem:[#allocation2 + $0x1e0] sm:$0xff]
    %v132 = vld [vmem:[#allocation2 + $0x1e8] sm:$0xff]
    %v133 = vld [vmem:[#allocation2 + $0x1f0] sm:$0xff]
    %v134 = vld [vmem:[#allocation2 + $0x1f8] sm:$0xff]
    %v135 = vld [vmem:[%s1] sm:$0x1]
    %136 = vmatprep.subr.bf16.mxu0 0
    %137 = vmatpush1.bf16.msra.mxu0 %v71
    %138 = vmatprep.subr.bf16.mxu0 0
    %139 = vmatpush1.bf16.msra.mxu0 %v72
    %140 = vmatprep.subr.bf16.mxu0 0
    %141 = vmatpush1.bf16.msra.mxu0 %v73
    %142 = vmatprep.subr.bf16.mxu0 0
    %143 = vmatpush1.bf16.msra.mxu0 %v74
    %144 = vmatprep.subr.bf16.mxu0 0
    %145 = vmatpush1.bf16.msra.mxu0 %v75
    %146 = vmatprep.subr.bf16.mxu0 0
    %147 = vmatpush1.bf16.msra.mxu0 %v76
    %148 = vmatprep.subr.bf16.mxu0 0
    %149 = vmatpush1.bf16.msra.mxu0 %v77
    %150 = vmatprep.subr.bf16.mxu0 0
    %151 = vmatpush1.bf16.msra.mxu0 %v78
    %152 = vmatprep.subr.bf16.mxu0 0
    %153 = vmatpush1.bf16.msra.mxu0 0
    %154 = vmatprep.subr.bf16.mxu0 0
    %155 = vmatpush1.bf16.msra.mxu0 0
    %156 = vmatprep.subr.bf16.mxu0 0
    %157 = vmatpush1.bf16.msra.mxu0 0
    %158 = vmatprep.subr.bf16.mxu0 0
    %159 = vmatpush1.bf16.msra.mxu0 0
    %160 = vmatprep.subr.bf16.mxu0 0
    %161 = vmatpush1.bf16.msra.mxu0 0
    %162 = vmatprep.subr.bf16.mxu0 0
    %163 = vmatpush1.bf16.msra.mxu0 0
    %164 = vmatprep.subr.bf16.mxu0 0
    %165 = vmatpush1.bf16.msra.mxu0 0
    %166 = vmatprep.subr.bf16.mxu0 0
    %167 = vmatpush1.bf16.msra.mxu0 0
    %168 = vmatprep.mubr.bf16.mxu0 0
    %169 = vmatmul.mubr.bf16.gmra.mrb[0].mxu0 %v58
    %v170 = vpop.f32.mrb[0].mxu0
    %v171 = vadd.f32 %v135, %v170
    %v172 = vpop.f32.mrb[0].mxu0
    %v173 = vpop.f32.mrb[0].mxu0
    %v174 = vpop.f32.mrb[0].mxu0
    %175 = vdwg.mxu0
    %176 = vmatprep.subr.bf16.mxu0 0
    %177 = vmatpush1.bf16.msra.mxu0 %v79
    %178 = vmatprep.subr.bf16.mxu0 0
    %179 = vmatpush1.bf16.msra.mxu0 %v80
    %180 = vmatprep.subr.bf16.mxu0 0
    %181 = vmatpush1.bf16.msra.mxu0 %v81
    %182 = vmatprep.subr.bf16.mxu0 0
    %183 = vmatpush1.bf16.msra.mxu0 %v82
    %184 = vmatprep.subr.bf16.mxu0 0
    %185 = vmatpush1.bf16.msra.mxu0 %v83
    %186 = vmatprep.subr.bf16.mxu0 0
    %187 = vmatpush1.bf16.msra.mxu0 %v84
    %188 = vmatprep.subr.bf16.mxu0 0
    %189 = vmatpush1.bf16.msra.mxu0 %v85
    %190 = vmatprep.subr.bf16.mxu0 0
    %191 = vmatpush1.bf16.msra.mxu0 %v86
    %192 = vmatprep.subr.bf16.mxu0 0
    %193 = vmatpush1.bf16.msra.mxu0 0
    %194 = vmatprep.subr.bf16.mxu0 0
    %195 = vmatpush1.bf16.msra.mxu0 0
    %196 = vmatprep.subr.bf16.mxu0 0
    %197 = vmatpush1.bf16.msra.mxu0 0
    %198 = vmatprep.subr.bf16.mxu0 0
    %199 = vmatpush1.bf16.msra.mxu0 0
    %200 = vmatprep.subr.bf16.mxu0 0
    %201 = vmatpush1.bf16.msra.mxu0 0
    %202 = vmatprep.subr.bf16.mxu0 0
    %203 = vmatpush1.bf16.msra.mxu0 0
    %204 = vmatprep.subr.bf16.mxu0 0
    %205 = vmatpush1.bf16.msra.mxu0 0
    %206 = vmatprep.subr.bf16.mxu0 0
    %207 = vmatpush1.bf16.msra.mxu0 0
    %208 = vmatprep.mubr.bf16.mxu0 0
    %209 = vmatmul.mubr.bf16.gmra.mrb[0].mxu0 %v59
    %v210 = vpop.f32.mrb[0].mxu0
    %v211 = vadd.f32 %v135, %v210
    %v212 = vpop.f32.mrb[0].mxu0
    %v213 = vpop.f32.mrb[0].mxu0
    %v214 = vpop.f32.mrb[0].mxu0
    %215 = vdwg.mxu0
    %216 = vmatprep.subr.bf16.mxu0 0
    %217 = vmatpush1.bf16.msra.mxu0 %v87
    %218 = vmatprep.subr.bf16.mxu0 0
    %219 = vmatpush1.bf16.msra.mxu0 %v88
    %220 = vmatprep.subr.bf16.mxu0 0
    %221 = vmatpush1.bf16.msra.mxu0 %v89
    %222 = vmatprep.subr.bf16.mxu0 0
    %223 = vmatpush1.bf16.msra.mxu0 %v90
    %224 = vmatprep.subr.bf16.mxu0 0
    %225 = vmatpush1.bf16.msra.mxu0 %v91
    %226 = vmatprep.subr.bf16.mxu0 0
    %227 = vmatpush1.bf16.msra.mxu0 %v92
    %228 = vmatprep.subr.bf16.mxu0 0
    %229 = vmatpush1.bf16.msra.mxu0 %v93
    %230 = vmatprep.subr.bf16.mxu0 0
    %231 = vmatpush1.bf16.msra.mxu0 %v94
    %232 = vmatprep.subr.bf16.mxu0 0
    %233 = vmatpush1.bf16.msra.mxu0 0
    %234 = vmatprep.subr.bf16.mxu0 0
    %235 = vmatpush1.bf16.msra.mxu0 0
    %236 = vmatprep.subr.bf16.mxu0 0
    %237 = vmatpush1.bf16.msra.mxu0 0
    %238 = vmatprep.subr.bf16.mxu0 0
    %239 = vmatpush1.bf16.msra.mxu0 0
    %240 = vmatprep.subr.bf16.mxu0 0
    %241 = vmatpush1.bf16.msra.mxu0 0
    %242 = vmatprep.subr.bf16.mxu0 0
    %243 = vmatpush1.bf16.msra.mxu0 0
    %244 = vmatprep.subr.bf16.mxu0 0
    %245 = vmatpush1.bf16.msra.mxu0 0
    %246 = vmatprep.subr.bf16.mxu0 0
    %247 = vmatpush1.bf16.msra.mxu0 0
    %248 = vmatprep.mubr.bf16.mxu0 0
    %249 = vmatmul.mubr.bf16.gmra.mrb[0].mxu0 %v60
    %v250 = vpop.f32.mrb[0].mxu0
    %v251 = vadd.f32 %v135, %v250
    %v252 = vpop.f32.mrb[0].mxu0
    %v253 = vpop.f32.mrb[0].mxu0
    %v254 = vpop.f32.mrb[0].mxu0
    %255 = vdwg.mxu0
    %256 = vmatprep.subr.bf16.mxu0 0
    %257 = vmatpush1.bf16.msra.mxu0 %v95
    %258 = vmatprep.subr.bf16.mxu0 0
    %259 = vmatpush1.bf16.msra.mxu0 %v96
    %260 = vmatprep.subr.bf16.mxu0 0
    %261 = vmatpush1.bf16.msra.mxu0 %v97
    %262 = vmatprep.subr.bf16.mxu0 0
    %263 = vmatpush1.bf16.msra.mxu0 %v98
    %264 = vmatprep.subr.bf16.mxu0 0
    %265 = vmatpush1.bf16.msra.mxu0 %v99
    %266 = vmatprep.subr.bf16.mxu0 0
    %267 = vmatpush1.bf16.msra.mxu0 %v100
    %268 = vmatprep.subr.bf16.mxu0 0
    %269 = vmatpush1.bf16.msra.mxu0 %v101
    %270 = vmatprep.subr.bf16.mxu0 0
    %271 = vmatpush1.bf16.msra.mxu0 %v102
    %272 = vmatprep.subr.bf16.mxu0 0
    %273 = vmatpush1.bf16.msra.mxu0 0
    %274 = vmatprep.subr.bf16.mxu0 0
    %275 = vmatpush1.bf16.msra.mxu0 0
    %276 = vmatprep.subr.bf16.mxu0 0
    %277 = vmatpush1.bf16.msra.mxu0 0
    %278 = vmatprep.subr.bf16.mxu0 0
    %279 = vmatpush1.bf16.msra.mxu0 0
    %280 = vmatprep.subr.bf16.mxu0 0
    %281 = vmatpush1.bf16.msra.mxu0 0
    %282 = vmatprep.subr.bf16.mxu0 0
    %283 = vmatpush1.bf16.msra.mxu0 0
    %284 = vmatprep.subr.bf16.mxu0 0
    %285 = vmatpush1.bf16.msra.mxu0 0
    %286 = vmatprep.subr.bf16.mxu0 0
    %287 = vmatpush1.bf16.msra.mxu0 0
    %288 = vmatprep.mubr.bf16.mxu0 0
    %289 = vmatmul.mubr.bf16.gmra.mrb[0].mxu0 %v61
    %v290 = vpop.f32.mrb[0].mxu0
    %v291 = vadd.f32 %v135, %v290
    %v292 = vpop.f32.mrb[0].mxu0
    %v293 = vpop.f32.mrb[0].mxu0
    %v294 = vpop.f32.mrb[0].mxu0
    %295 = vdwg.mxu0
    %296 = vmatprep.subr.bf16.mxu0 0
    %297 = vmatpush1.bf16.msra.mxu0 %v103
    %298 = vmatprep.subr.bf16.mxu0 0
    %299 = vmatpush1.bf16.msra.mxu0 %v104
    %300 = vmatprep.subr.bf16.mxu0 0
    %301 = vmatpush1.bf16.msra.mxu0 %v105
    %302 = vmatprep.subr.bf16.mxu0 0
    %303 = vmatpush1.bf16.msra.mxu0 %v106
    %304 = vmatprep.subr.bf16.mxu0 0
    %305 = vmatpush1.bf16.msra.mxu0 %v107
    %306 = vmatprep.subr.bf16.mxu0 0
    %307 = vmatpush1.bf16.msra.mxu0 %v108
    %308 = vmatprep.subr.bf16.mxu0 0
    %309 = vmatpush1.bf16.msra.mxu0 %v109
    %310 = vmatprep.subr.bf16.mxu0 0
    %311 = vmatpush1.bf16.msra.mxu0 %v110
    %312 = vmatprep.subr.bf16.mxu0 0
    %313 = vmatpush1.bf16.msra.mxu0 0
    %314 = vmatprep.subr.bf16.mxu0 0
    %315 = vmatpush1.bf16.msra.mxu0 0
    %316 = vmatprep.subr.bf16.mxu0 0
    %317 = vmatpush1.bf16.msra.mxu0 0
    %318 = vmatprep.subr.bf16.mxu0 0
    %319 = vmatpush1.bf16.msra.mxu0 0
    %320 = vmatprep.subr.bf16.mxu0 0
    %321 = vmatpush1.bf16.msra.mxu0 0
    %322 = vmatprep.subr.bf16.mxu0 0
    %323 = vmatpush1.bf16.msra.mxu0 0
    %324 = vmatprep.subr.bf16.mxu0 0
    %325 = vmatpush1.bf16.msra.mxu0 0
    %326 = vmatprep.subr.bf16.mxu0 0
    %327 = vmatpush1.bf16.msra.mxu0 0
    %328 = vmatprep.mubr.bf16.mxu0 0
    %329 = vmatmul.mubr.bf16.gmra.mrb[0].mxu0 %v62
    %v330 = vpop.f32.mrb[0].mxu0
    %v331 = vadd.f32 %v135, %v330
    %v332 = vpop.f32.mrb[0].mxu0
    %v333 = vpop.f32.mrb[0].mxu0
    %v334 = vpop.f32.mrb[0].mxu0
    %335 = vdwg.mxu0
    %336 = vmatprep.subr.bf16.mxu0 0
    %337 = vmatpush1.bf16.msra.mxu0 %v111
    %338 = vmatprep.subr.bf16.mxu0 0
    %339 = vmatpush1.bf16.msra.mxu0 %v112
    %340 = vmatprep.subr.bf16.mxu0 0
    %341 = vmatpush1.bf16.msra.mxu0 %v113
    %342 = vmatprep.subr.bf16.mxu0 0
    %343 = vmatpush1.bf16.msra.mxu0 %v114
    %344 = vmatprep.subr.bf16.mxu0 0
    %345 = vmatpush1.bf16.msra.mxu0 %v115
    %346 = vmatprep.subr.bf16.mxu0 0
    %347 = vmatpush1.bf16.msra.mxu0 %v116
    %348 = vmatprep.subr.bf16.mxu0 0
    %349 = vmatpush1.bf16.msra.mxu0 %v117
    %350 = vmatprep.subr.bf16.mxu0 0
    %351 = vmatpush1.bf16.msra.mxu0 %v118
    %352 = vmatprep.subr.bf16.mxu0 0
    %353 = vmatpush1.bf16.msra.mxu0 0
    %354 = vmatprep.subr.bf16.mxu0 0
    %355 = vmatpush1.bf16.msra.mxu0 0
    %356 = vmatprep.subr.bf16.mxu0 0
    %357 = vmatpush1.bf16.msra.mxu0 0
    %358 = vmatprep.subr.bf16.mxu0 0
    %359 = vmatpush1.bf16.msra.mxu0 0
    %360 = vmatprep.subr.bf16.mxu0 0
    %361 = vmatpush1.bf16.msra.mxu0 0
    %362 = vmatprep.subr.bf16.mxu0 0
    %363 = vmatpush1.bf16.msra.mxu0 0
    %364 = vmatprep.subr.bf16.mxu0 0
    %365 = vmatpush1.bf16.msra.mxu0 0
    %366 = vmatprep.subr.bf16.mxu0 0
    %367 = vmatpush1.bf16.msra.mxu0 0
    %368 = vmatprep.mubr.bf16.mxu0 0
    %369 = vmatmul.mubr.bf16.gmra.mrb[0].mxu0 %v63
    %v370 = vpop.f32.mrb[0].mxu0
    %v371 = vadd.f32 %v135, %v370
    %v372 = vpop.f32.mrb[0].mxu0
    %v373 = vpop.f32.mrb[0].mxu0
    %v374 = vpop.f32.mrb[0].mxu0
    %375 = vdwg.mxu0
    %376 = vmatprep.subr.bf16.mxu0 0
    %377 = vmatpush1.bf16.msra.mxu0 %v119
    %378 = vmatprep.subr.bf16.mxu0 0
    %379 = vmatpush1.bf16.msra.mxu0 %v120
    %380 = vmatprep.subr.bf16.mxu0 0
    %381 = vmatpush1.bf16.msra.mxu0 %v121
    %382 = vmatprep.subr.bf16.mxu0 0
    %383 = vmatpush1.bf16.msra.mxu0 %v122
    %384 = vmatprep.subr.bf16.mxu0 0
    %385 = vmatpush1.bf16.msra.mxu0 %v123
    %386 = vmatprep.subr.bf16.mxu0 0
    %387 = vmatpush1.bf16.msra.mxu0 %v124
    %388 = vmatprep.subr.bf16.mxu0 0
    %389 = vmatpush1.bf16.msra.mxu0 %v125
    %390 = vmatprep.subr.bf16.mxu0 0
    %391 = vmatpush1.bf16.msra.mxu0 %v126
    %392 = vmatprep.subr.bf16.mxu0 0
    %393 = vmatpush1.bf16.msra.mxu0 0
    %394 = vmatprep.subr.bf16.mxu0 0
    %395 = vmatpush1.bf16.msra.mxu0 0
    %396 = vmatprep.subr.bf16.mxu0 0
    %397 = vmatpush1.bf16.msra.mxu0 0
    %398 = vmatprep.subr.bf16.mxu0 0
    %399 = vmatpush1.bf16.msra.mxu0 0
    %400 = vmatprep.subr.bf16.mxu0 0
    %401 = vmatpush1.bf16.msra.mxu0 0
    %402 = vmatprep.subr.bf16.mxu0 0
    %403 = vmatpush1.bf16.msra.mxu0 0
    %404 = vmatprep.subr.bf16.mxu0 0
    %405 = vmatpush1.bf16.msra.mxu0 0
    %406 = vmatprep.subr.bf16.mxu0 0
    %407 = vmatpush1.bf16.msra.mxu0 0
    %408 = vmatprep.mubr.bf16.mxu0 0
    %409 = vmatmul.mubr.bf16.gmra.mrb[0].mxu0 %v64
    %v410 = vpop.f32.mrb[0].mxu0
    %v411 = vadd.f32 %v135, %v410
    %v412 = vpop.f32.mrb[0].mxu0
    %v413 = vpop.f32.mrb[0].mxu0
    %v414 = vpop.f32.mrb[0].mxu0
    %415 = vdwg.mxu0
    %416 = vmatprep.subr.bf16.mxu0 0
    %417 = vmatpush1.bf16.msra.mxu0 %v127
    %418 = vmatprep.subr.bf16.mxu0 0
    %419 = vmatpush1.bf16.msra.mxu0 %v128
    %420 = vmatprep.subr.bf16.mxu0 0
    %421 = vmatpush1.bf16.msra.mxu0 %v129
    %422 = vmatprep.subr.bf16.mxu0 0
    %423 = vmatpush1.bf16.msra.mxu0 %v130
    %424 = vmatprep.subr.bf16.mxu0 0
    %425 = vmatpush1.bf16.msra.mxu0 %v131
    %426 = vmatprep.subr.bf16.mxu0 0
    %427 = vmatpush1.bf16.msra.mxu0 %v132
    %428 = vmatprep.subr.bf16.mxu0 0
    %429 = vmatpush1.bf16.msra.mxu0 %v133
    %430 = vmatprep.subr.bf16.mxu0 0
    %431 = vmatpush1.bf16.msra.mxu0 %v134
    %432 = vmatprep.subr.bf16.mxu0 0
    %433 = vmatpush1.bf16.msra.mxu0 0
    %434 = vmatprep.subr.bf16.mxu0 0
    %435 = vmatpush1.bf16.msra.mxu0 0
    %436 = vmatprep.subr.bf16.mxu0 0
    %437 = vmatpush1.bf16.msra.mxu0 0
    %438 = vmatprep.subr.bf16.mxu0 0
    %439 = vmatpush1.bf16.msra.mxu0 0
    %440 = vmatprep.subr.bf16.mxu0 0
    %441 = vmatpush1.bf16.msra.mxu0 0
    %442 = vmatprep.subr.bf16.mxu0 0
    %443 = vmatpush1.bf16.msra.mxu0 0
    %444 = vmatprep.subr.bf16.mxu0 0
    %445 = vmatpush1.bf16.msra.mxu0 0
    %446 = vmatprep.subr.bf16.mxu0 0
    %447 = vmatpush1.bf16.msra.mxu0 0
    %448 = vmatprep.mubr.bf16.mxu0 0
    %449 = vmatmul.mubr.bf16.gmra.mrb[0].mxu0 %v65
    %v450 = vpop.f32.mrb[0].mxu0
    %v451 = vadd.f32 %v135, %v450
    %v452 = vpop.f32.mrb[0].mxu0
    %v453 = vpop.f32.mrb[0].mxu0
    %v454 = vpop.f32.mrb[0].mxu0
    %455 = vdwg.mxu0
    %v456 = vmul.f32 %v171, 0.5
    %v457 = vmul.f32 %v211, 0.5
    %v458 = vmul.f32 %v251, 0.5
    %v459 = vmul.f32 %v291, 0.5
    %v460 = vmul.f32 %v331, 0.5
    %v461 = vmul.f32 %v371, 0.5
    %v462 = vmul.f32 %v411, 0.5
    %v463 = vmul.f32 %v451, 0.5
    %v464 = vmul.f32 %v171, 0.70710677
    %v465 = vmul.f32 %v211, 0.70710677
    %v466 = vmul.f32 %v251, 0.70710677
    %v467 = vmul.f32 %v291, 0.70710677
    %v468 = vmul.f32 %v331, 0.70710677
    %v469 = vmul.f32 %v371, 0.70710677
    %v470 = vmul.f32 %v411, 0.70710677
    %v471 = vmul.f32 %v451, 0.70710677
    %v472 = verf.f32.pop %v464
    %v473 = verf.f32.pop %v465
    %v474 = verf.f32.pop %v466
    %v475 = verf.f32.pop %v467
    %v476 = verf.f32.pop %v468
    %v477 = verf.f32.pop %v469
    %v478 = verf.f32.pop %v470
    %v479 = verf.f32.pop %v471
    %v480 = vadd.f32 %v472, 1.0
    %v481 = vadd.f32 %v473, 1.0
    %v482 = vadd.f32 %v474, 1.0
    %v483 = vadd.f32 %v475, 1.0
    %v484 = vadd.f32 %v476, 1.0
    %v485 = vadd.f32 %v477, 1.0
    %v486 = vadd.f32 %v478, 1.0
    %v487 = vadd.f32 %v479, 1.0
    %v488 = vmul.f32 %v456, %v480
    %v489 = vmul.f32 %v457, %v481
    %v490 = vmul.f32 %v458, %v482
    %v491 = vmul.f32 %v459, %v483
    %v492 = vmul.f32 %v460, %v484
    %v493 = vmul.f32 %v461, %v485
    %v494 = vmul.f32 %v462, %v486
    %v495 = vmul.f32 %v463, %v487
    %v496 = vpack.c.bf16 %v488, %v488
    %v497 = vpack.c.bf16 %v489, %v489
    %v498 = vpack.c.bf16 %v490, %v490
    %v499 = vpack.c.bf16 %v491, %v491
    %v500 = vpack.c.bf16 %v492, %v492
    %v501 = vpack.c.bf16 %v493, %v493
    %v502 = vpack.c.bf16 %v494, %v494
    %v503 = vpack.c.bf16 %v495, %v495
    %s504 = sshll.u32 %s68, 4
    %505 = dma.done %s38, %s504
    %s506 = scalar_lea.sflag [#allocation5], 2
    // Predicated region
    $region26: #{hebby_rnn_forward.1} parent=1 // pred_check
      _
    $region27: #{hebby_rnn_forward.1} parent=1 // pred_check_branch
      %508 = sbr.rel target = $region29
    $region28: #{hebby_rnn_forward.1} parent=1 // pred_region
      %509 = sst [smem:[#allocation12]] [#allocation17]
      %510 = sst [smem:[#allocation13]] [#allocation16]
    $region29: #{hebby_rnn_forward.1} parent=1 // pred_fallthru
      _
    %512 = shalt.err (0)
    %s514 = sshll.u32 [#allocation3], 4
    %s515 = int_to_ptr.vmem [resolvable:$true] %s514
    %517 = dma.hbm_to_vmem [thread:$0]  %s5, 8192, %s515, %s506
    %s518 = scalar_lea.sflag [#allocation5], 3
    // Predicated region
    $region30: #{hebby_rnn_forward.1} parent=1 // pred_check
      _
    $region31: #{hebby_rnn_forward.1} parent=1 // pred_check_branch
      %520 = sbr.rel target = $region33
    $region32: #{hebby_rnn_forward.1} parent=1 // pred_region
      %521 = sst [smem:[#allocation12]] [#allocation19]
      %522 = sst [smem:[#allocation13]] [#allocation18]
    $region33: #{hebby_rnn_forward.1} parent=1 // pred_fallthru
      _
    %524 = shalt.err (0)
    %s526 = sshll.u32 [#allocation4], 4
    %s527 = int_to_ptr.vmem [resolvable:$true] %s526
    %529 = dma.hbm_to_vmem [thread:$0]  %s6, 8192, %s527, %s518
    %v530 = vld [vmem:[%s37] sm:$0xff]
    %v531 = vld [vmem:[%s37 + $0x8] sm:$0xff]
    %v532 = vld [vmem:[%s37 + $0x10] sm:$0xff]
    %v533 = vld [vmem:[%s37 + $0x18] sm:$0xff]
    %v534 = vld [vmem:[%s37 + $0x20] sm:$0xff]
    %v535 = vld [vmem:[%s37 + $0x28] sm:$0xff]
    %v536 = vld [vmem:[%s37 + $0x30] sm:$0xff]
    %v537 = vld [vmem:[%s37 + $0x38] sm:$0xff]
    %v538 = vld [vmem:[%s37 + $0x40] sm:$0xff]
    %v539 = vld [vmem:[%s37 + $0x48] sm:$0xff]
    %v540 = vld [vmem:[%s37 + $0x50] sm:$0xff]
    %v541 = vld [vmem:[%s37 + $0x58] sm:$0xff]
    %v542 = vld [vmem:[%s37 + $0x60] sm:$0xff]
    %v543 = vld [vmem:[%s37 + $0x68] sm:$0xff]
    %v544 = vld [vmem:[%s37 + $0x70] sm:$0xff]
    %v545 = vld [vmem:[%s37 + $0x78] sm:$0xff]
    %v546 = vld [vmem:[%s37 + $0x80] sm:$0xff]
    %v547 = vld [vmem:[%s37 + $0x88] sm:$0xff]
    %v548 = vld [vmem:[%s37 + $0x90] sm:$0xff]
    %v549 = vld [vmem:[%s37 + $0x98] sm:$0xff]
    %v550 = vld [vmem:[%s37 + $0xa0] sm:$0xff]
    %v551 = vld [vmem:[%s37 + $0xa8] sm:$0xff]
    %v552 = vld [vmem:[%s37 + $0xb0] sm:$0xff]
    %v553 = vld [vmem:[%s37 + $0xb8] sm:$0xff]
    %v554 = vld [vmem:[%s37 + $0xc0] sm:$0xff]
    %v555 = vld [vmem:[%s37 + $0xc8] sm:$0xff]
    %v556 = vld [vmem:[%s37 + $0xd0] sm:$0xff]
    %v557 = vld [vmem:[%s37 + $0xd8] sm:$0xff]
    %v558 = vld [vmem:[%s37 + $0xe0] sm:$0xff]
    %v559 = vld [vmem:[%s37 + $0xe8] sm:$0xff]
    %v560 = vld [vmem:[%s37 + $0xf0] sm:$0xff]
    %v561 = vld [vmem:[%s37 + $0xf8] sm:$0xff]
    %v562 = vld [vmem:[%s37 + $0x100] sm:$0xff]
    %v563 = vld [vmem:[%s37 + $0x108] sm:$0xff]
    %v564 = vld [vmem:[%s37 + $0x110] sm:$0xff]
    %v565 = vld [vmem:[%s37 + $0x118] sm:$0xff]
    %v566 = vld [vmem:[%s37 + $0x120] sm:$0xff]
    %v567 = vld [vmem:[%s37 + $0x128] sm:$0xff]
    %v568 = vld [vmem:[%s37 + $0x130] sm:$0xff]
    %v569 = vld [vmem:[%s37 + $0x138] sm:$0xff]
    %v570 = vld [vmem:[%s37 + $0x140] sm:$0xff]
    %v571 = vld [vmem:[%s37 + $0x148] sm:$0xff]
    %v572 = vld [vmem:[%s37 + $0x150] sm:$0xff]
    %v573 = vld [vmem:[%s37 + $0x158] sm:$0xff]
    %v574 = vld [vmem:[%s37 + $0x160] sm:$0xff]
    %v575 = vld [vmem:[%s37 + $0x168] sm:$0xff]
    %v576 = vld [vmem:[%s37 + $0x170] sm:$0xff]
    %v577 = vld [vmem:[%s37 + $0x178] sm:$0xff]
    %v578 = vld [vmem:[%s37 + $0x180] sm:$0xff]
    %v579 = vld [vmem:[%s37 + $0x188] sm:$0xff]
    %v580 = vld [vmem:[%s37 + $0x190] sm:$0xff]
    %v581 = vld [vmem:[%s37 + $0x198] sm:$0xff]
    %v582 = vld [vmem:[%s37 + $0x1a0] sm:$0xff]
    %v583 = vld [vmem:[%s37 + $0x1a8] sm:$0xff]
    %v584 = vld [vmem:[%s37 + $0x1b0] sm:$0xff]
    %v585 = vld [vmem:[%s37 + $0x1b8] sm:$0xff]
    %v586 = vld [vmem:[%s37 + $0x1c0] sm:$0xff]
    %v587 = vld [vmem:[%s37 + $0x1c8] sm:$0xff]
    %v588 = vld [vmem:[%s37 + $0x1d0] sm:$0xff]
    %v589 = vld [vmem:[%s37 + $0x1d8] sm:$0xff]
    %v590 = vld [vmem:[%s37 + $0x1e0] sm:$0xff]
    %v591 = vld [vmem:[%s37 + $0x1e8] sm:$0xff]
    %v592 = vld [vmem:[%s37 + $0x1f0] sm:$0xff]
    %v593 = vld [vmem:[%s37 + $0x1f8] sm:$0xff]
    %s594 = scalar_lea.vmem %s1, 1
    %v595 = vld [vmem:[%s594] sm:$0x1]
    %596 = vmatprep.subr.bf16.mxu0 0
    %597 = vmatpush1.bf16.msra.mxu0 %v530
    %598 = vmatprep.subr.bf16.mxu0 0
    %599 = vmatpush1.bf16.msra.mxu0 %v531
    %600 = vmatprep.subr.bf16.mxu0 0
    %601 = vmatpush1.bf16.msra.mxu0 %v532
    %602 = vmatprep.subr.bf16.mxu0 0
    %603 = vmatpush1.bf16.msra.mxu0 %v533
    %604 = vmatprep.subr.bf16.mxu0 0
    %605 = vmatpush1.bf16.msra.mxu0 %v534
    %606 = vmatprep.subr.bf16.mxu0 0
    %607 = vmatpush1.bf16.msra.mxu0 %v535
    %608 = vmatprep.subr.bf16.mxu0 0
    %609 = vmatpush1.bf16.msra.mxu0 %v536
    %610 = vmatprep.subr.bf16.mxu0 0
    %611 = vmatpush1.bf16.msra.mxu0 %v537
    %612 = vmatprep.subr.bf16.mxu0 0
    %613 = vmatpush1.bf16.msra.mxu0 0
    %614 = vmatprep.subr.bf16.mxu0 0
    %615 = vmatpush1.bf16.msra.mxu0 0
    %616 = vmatprep.subr.bf16.mxu0 0
    %617 = vmatpush1.bf16.msra.mxu0 0
    %618 = vmatprep.subr.bf16.mxu0 0
    %619 = vmatpush1.bf16.msra.mxu0 0
    %620 = vmatprep.subr.bf16.mxu0 0
    %621 = vmatpush1.bf16.msra.mxu0 0
    %622 = vmatprep.subr.bf16.mxu0 0
    %623 = vmatpush1.bf16.msra.mxu0 0
    %624 = vmatprep.subr.bf16.mxu0 0
    %625 = vmatpush1.bf16.msra.mxu0 0
    %626 = vmatprep.subr.bf16.mxu0 0
    %627 = vmatpush1.bf16.msra.mxu0 0
    %628 = vmatprep.mubr.bf16.mxu0 0
    %629 = vmatmul.mubr.bf16.gmra.mrb[0].mxu0 %v496
    %v630 = vpop.f32.mrb[0].mxu0
    %v631 = vadd.f32 %v595, %v630
    %v632 = vpop.f32.mrb[0].mxu0
    %v633 = vpop.f32.mrb[0].mxu0
    %v634 = vpop.f32.mrb[0].mxu0
    %635 = vdwg.mxu0
    %636 = vmatprep.subr.bf16.mxu0 0
    %637 = vmatpush1.bf16.msra.mxu0 %v538
    %638 = vmatprep.subr.bf16.mxu0 0
    %639 = vmatpush1.bf16.msra.mxu0 %v539
    %640 = vmatprep.subr.bf16.mxu0 0
    %641 = vmatpush1.bf16.msra.mxu0 %v540
    %642 = vmatprep.subr.bf16.mxu0 0
    %643 = vmatpush1.bf16.msra.mxu0 %v541
    %644 = vmatprep.subr.bf16.mxu0 0
    %645 = vmatpush1.bf16.msra.mxu0 %v542
    %646 = vmatprep.subr.bf16.mxu0 0
    %647 = vmatpush1.bf16.msra.mxu0 %v543
    %648 = vmatprep.subr.bf16.mxu0 0
    %649 = vmatpush1.bf16.msra.mxu0 %v544
    %650 = vmatprep.subr.bf16.mxu0 0
    %651 = vmatpush1.bf16.msra.mxu0 %v545
    %652 = vmatprep.subr.bf16.mxu0 0
    %653 = vmatpush1.bf16.msra.mxu0 0
    %654 = vmatprep.subr.bf16.mxu0 0
    %655 = vmatpush1.bf16.msra.mxu0 0
    %656 = vmatprep.subr.bf16.mxu0 0
    %657 = vmatpush1.bf16.msra.mxu0 0
    %658 = vmatprep.subr.bf16.mxu0 0
    %659 = vmatpush1.bf16.msra.mxu0 0
    %660 = vmatprep.subr.bf16.mxu0 0
    %661 = vmatpush1.bf16.msra.mxu0 0
    %662 = vmatprep.subr.bf16.mxu0 0
    %663 = vmatpush1.bf16.msra.mxu0 0
    %664 = vmatprep.subr.bf16.mxu0 0
    %665 = vmatpush1.bf16.msra.mxu0 0
    %666 = vmatprep.subr.bf16.mxu0 0
    %667 = vmatpush1.bf16.msra.mxu0 0
    %668 = vmatprep.mubr.bf16.mxu0 0
    %669 = vmatmul.mubr.bf16.gmra.mrb[0].mxu0 %v497
    %v670 = vpop.f32.mrb[0].mxu0
    %v671 = vadd.f32 %v595, %v670
    %v672 = vpop.f32.mrb[0].mxu0
    %v673 = vpop.f32.mrb[0].mxu0
    %v674 = vpop.f32.mrb[0].mxu0
    %675 = vdwg.mxu0
    %676 = vmatprep.subr.bf16.mxu0 0
    %677 = vmatpush1.bf16.msra.mxu0 %v546
    %678 = vmatprep.subr.bf16.mxu0 0
    %679 = vmatpush1.bf16.msra.mxu0 %v547
    %680 = vmatprep.subr.bf16.mxu0 0
    %681 = vmatpush1.bf16.msra.mxu0 %v548
    %682 = vmatprep.subr.bf16.mxu0 0
    %683 = vmatpush1.bf16.msra.mxu0 %v549
    %684 = vmatprep.subr.bf16.mxu0 0
    %685 = vmatpush1.bf16.msra.mxu0 %v550
    %686 = vmatprep.subr.bf16.mxu0 0
    %687 = vmatpush1.bf16.msra.mxu0 %v551
    %688 = vmatprep.subr.bf16.mxu0 0
    %689 = vmatpush1.bf16.msra.mxu0 %v552
    %690 = vmatprep.subr.bf16.mxu0 0
    %691 = vmatpush1.bf16.msra.mxu0 %v553
    %692 = vmatprep.subr.bf16.mxu0 0
    %693 = vmatpush1.bf16.msra.mxu0 0
    %694 = vmatprep.subr.bf16.mxu0 0
    %695 = vmatpush1.bf16.msra.mxu0 0
    %696 = vmatprep.subr.bf16.mxu0 0
    %697 = vmatpush1.bf16.msra.mxu0 0
    %698 = vmatprep.subr.bf16.mxu0 0
    %699 = vmatpush1.bf16.msra.mxu0 0
    %700 = vmatprep.subr.bf16.mxu0 0
    %701 = vmatpush1.bf16.msra.mxu0 0
    %702 = vmatprep.subr.bf16.mxu0 0
    %703 = vmatpush1.bf16.msra.mxu0 0
    %704 = vmatprep.subr.bf16.mxu0 0
    %705 = vmatpush1.bf16.msra.mxu0 0
    %706 = vmatprep.subr.bf16.mxu0 0
    %707 = vmatpush1.bf16.msra.mxu0 0
    %708 = vmatprep.mubr.bf16.mxu0 0
    %709 = vmatmul.mubr.bf16.gmra.mrb[0].mxu0 %v498
    %v710 = vpop.f32.mrb[0].mxu0
    %v711 = vadd.f32 %v595, %v710
    %v712 = vpop.f32.mrb[0].mxu0
    %v713 = vpop.f32.mrb[0].mxu0
    %v714 = vpop.f32.mrb[0].mxu0
    %715 = vdwg.mxu0
    %716 = vmatprep.subr.bf16.mxu0 0
    %717 = vmatpush1.bf16.msra.mxu0 %v554
    %718 = vmatprep.subr.bf16.mxu0 0
    %719 = vmatpush1.bf16.msra.mxu0 %v555
    %720 = vmatprep.subr.bf16.mxu0 0
    %721 = vmatpush1.bf16.msra.mxu0 %v556
    %722 = vmatprep.subr.bf16.mxu0 0
    %723 = vmatpush1.bf16.msra.mxu0 %v557
    %724 = vmatprep.subr.bf16.mxu0 0
    %725 = vmatpush1.bf16.msra.mxu0 %v558
    %726 = vmatprep.subr.bf16.mxu0 0
    %727 = vmatpush1.bf16.msra.mxu0 %v559
    %728 = vmatprep.subr.bf16.mxu0 0
    %729 = vmatpush1.bf16.msra.mxu0 %v560
    %730 = vmatprep.subr.bf16.mxu0 0
    %731 = vmatpush1.bf16.msra.mxu0 %v561
    %732 = vmatprep.subr.bf16.mxu0 0
    %733 = vmatpush1.bf16.msra.mxu0 0
    %734 = vmatprep.subr.bf16.mxu0 0
    %735 = vmatpush1.bf16.msra.mxu0 0
    %736 = vmatprep.subr.bf16.mxu0 0
    %737 = vmatpush1.bf16.msra.mxu0 0
    %738 = vmatprep.subr.bf16.mxu0 0
    %739 = vmatpush1.bf16.msra.mxu0 0
    %740 = vmatprep.subr.bf16.mxu0 0
    %741 = vmatpush1.bf16.msra.mxu0 0
    %742 = vmatprep.subr.bf16.mxu0 0
    %743 = vmatpush1.bf16.msra.mxu0 0
    %744 = vmatprep.subr.bf16.mxu0 0
    %745 = vmatpush1.bf16.msra.mxu0 0
    %746 = vmatprep.subr.bf16.mxu0 0
    %747 = vmatpush1.bf16.msra.mxu0 0
    %748 = vmatprep.mubr.bf16.mxu0 0
    %749 = vmatmul.mubr.bf16.gmra.mrb[0].mxu0 %v499
    %v750 = vpop.f32.mrb[0].mxu0
    %v751 = vadd.f32 %v595, %v750
    %v752 = vpop.f32.mrb[0].mxu0
    %v753 = vpop.f32.mrb[0].mxu0
    %v754 = vpop.f32.mrb[0].mxu0
    %755 = vdwg.mxu0
    %756 = vmatprep.subr.bf16.mxu0 0
    %757 = vmatpush1.bf16.msra.mxu0 %v562
    %758 = vmatprep.subr.bf16.mxu0 0
    %759 = vmatpush1.bf16.msra.mxu0 %v563
    %760 = vmatprep.subr.bf16.mxu0 0
    %761 = vmatpush1.bf16.msra.mxu0 %v564
    %762 = vmatprep.subr.bf16.mxu0 0
    %763 = vmatpush1.bf16.msra.mxu0 %v565
    %764 = vmatprep.subr.bf16.mxu0 0
    %765 = vmatpush1.bf16.msra.mxu0 %v566
    %766 = vmatprep.subr.bf16.mxu0 0
    %767 = vmatpush1.bf16.msra.mxu0 %v567
    %768 = vmatprep.subr.bf16.mxu0 0
    %769 = vmatpush1.bf16.msra.mxu0 %v568
    %770 = vmatprep.subr.bf16.mxu0 0
    %771 = vmatpush1.bf16.msra.mxu0 %v569
    %772 = vmatprep.subr.bf16.mxu0 0
    %773 = vmatpush1.bf16.msra.mxu0 0
    %774 = vmatprep.subr.bf16.mxu0 0
    %775 = vmatpush1.bf16.msra.mxu0 0
    %776 = vmatprep.subr.bf16.mxu0 0
    %777 = vmatpush1.bf16.msra.mxu0 0
    %778 = vmatprep.subr.bf16.mxu0 0
    %779 = vmatpush1.bf16.msra.mxu0 0
    %780 = vmatprep.subr.bf16.mxu0 0
    %781 = vmatpush1.bf16.msra.mxu0 0
    %782 = vmatprep.subr.bf16.mxu0 0
    %783 = vmatpush1.bf16.msra.mxu0 0
    %784 = vmatprep.subr.bf16.mxu0 0
    %785 = vmatpush1.bf16.msra.mxu0 0
    %786 = vmatprep.subr.bf16.mxu0 0
    %787 = vmatpush1.bf16.msra.mxu0 0
    %788 = vmatprep.mubr.bf16.mxu0 0
    %789 = vmatmul.mubr.bf16.gmra.mrb[0].mxu0 %v500
    %v790 = vpop.f32.mrb[0].mxu0
    %v791 = vadd.f32 %v595, %v790
    %v792 = vpop.f32.mrb[0].mxu0
    %v793 = vpop.f32.mrb[0].mxu0
    %v794 = vpop.f32.mrb[0].mxu0
    %795 = vdwg.mxu0
    %796 = vmatprep.subr.bf16.mxu0 0
    %797 = vmatpush1.bf16.msra.mxu0 %v570
    %798 = vmatprep.subr.bf16.mxu0 0
    %799 = vmatpush1.bf16.msra.mxu0 %v571
    %800 = vmatprep.subr.bf16.mxu0 0
    %801 = vmatpush1.bf16.msra.mxu0 %v572
    %802 = vmatprep.subr.bf16.mxu0 0
    %803 = vmatpush1.bf16.msra.mxu0 %v573
    %804 = vmatprep.subr.bf16.mxu0 0
    %805 = vmatpush1.bf16.msra.mxu0 %v574
    %806 = vmatprep.subr.bf16.mxu0 0
    %807 = vmatpush1.bf16.msra.mxu0 %v575
    %808 = vmatprep.subr.bf16.mxu0 0
    %809 = vmatpush1.bf16.msra.mxu0 %v576
    %810 = vmatprep.subr.bf16.mxu0 0
    %811 = vmatpush1.bf16.msra.mxu0 %v577
    %812 = vmatprep.subr.bf16.mxu0 0
    %813 = vmatpush1.bf16.msra.mxu0 0
    %814 = vmatprep.subr.bf16.mxu0 0
    %815 = vmatpush1.bf16.msra.mxu0 0
    %816 = vmatprep.subr.bf16.mxu0 0
    %817 = vmatpush1.bf16.msra.mxu0 0
    %818 = vmatprep.subr.bf16.mxu0 0
    %819 = vmatpush1.bf16.msra.mxu0 0
    %820 = vmatprep.subr.bf16.mxu0 0
    %821 = vmatpush1.bf16.msra.mxu0 0
    %822 = vmatprep.subr.bf16.mxu0 0
    %823 = vmatpush1.bf16.msra.mxu0 0
    %824 = vmatprep.subr.bf16.mxu0 0
    %825 = vmatpush1.bf16.msra.mxu0 0
    %826 = vmatprep.subr.bf16.mxu0 0
    %827 = vmatpush1.bf16.msra.mxu0 0
    %828 = vmatprep.mubr.bf16.mxu0 0
    %829 = vmatmul.mubr.bf16.gmra.mrb[0].mxu0 %v501
    %v830 = vpop.f32.mrb[0].mxu0
    %v831 = vadd.f32 %v595, %v830
    %v832 = vpop.f32.mrb[0].mxu0
    %v833 = vpop.f32.mrb[0].mxu0
    %v834 = vpop.f32.mrb[0].mxu0
    %835 = vdwg.mxu0
    %836 = vmatprep.subr.bf16.mxu0 0
    %837 = vmatpush1.bf16.msra.mxu0 %v578
    %838 = vmatprep.subr.bf16.mxu0 0
    %839 = vmatpush1.bf16.msra.mxu0 %v579
    %840 = vmatprep.subr.bf16.mxu0 0
    %841 = vmatpush1.bf16.msra.mxu0 %v580
    %842 = vmatprep.subr.bf16.mxu0 0
    %843 = vmatpush1.bf16.msra.mxu0 %v581
    %844 = vmatprep.subr.bf16.mxu0 0
    %845 = vmatpush1.bf16.msra.mxu0 %v582
    %846 = vmatprep.subr.bf16.mxu0 0
    %847 = vmatpush1.bf16.msra.mxu0 %v583
    %848 = vmatprep.subr.bf16.mxu0 0
    %849 = vmatpush1.bf16.msra.mxu0 %v584
    %850 = vmatprep.subr.bf16.mxu0 0
    %851 = vmatpush1.bf16.msra.mxu0 %v585
    %852 = vmatprep.subr.bf16.mxu0 0
    %853 = vmatpush1.bf16.msra.mxu0 0
    %854 = vmatprep.subr.bf16.mxu0 0
    %855 = vmatpush1.bf16.msra.mxu0 0
    %856 = vmatprep.subr.bf16.mxu0 0
    %857 = vmatpush1.bf16.msra.mxu0 0
    %858 = vmatprep.subr.bf16.mxu0 0
    %859 = vmatpush1.bf16.msra.mxu0 0
    %860 = vmatprep.subr.bf16.mxu0 0
    %861 = vmatpush1.bf16.msra.mxu0 0
    %862 = vmatprep.subr.bf16.mxu0 0
    %863 = vmatpush1.bf16.msra.mxu0 0
    %864 = vmatprep.subr.bf16.mxu0 0
    %865 = vmatpush1.bf16.msra.mxu0 0
    %866 = vmatprep.subr.bf16.mxu0 0
    %867 = vmatpush1.bf16.msra.mxu0 0
    %868 = vmatprep.mubr.bf16.mxu0 0
    %869 = vmatmul.mubr.bf16.gmra.mrb[0].mxu0 %v502
    %v870 = vpop.f32.mrb[0].mxu0
    %v871 = vadd.f32 %v595, %v870
    %v872 = vpop.f32.mrb[0].mxu0
    %v873 = vpop.f32.mrb[0].mxu0
    %v874 = vpop.f32.mrb[0].mxu0
    %875 = vdwg.mxu0
    %876 = vmatprep.subr.bf16.mxu0 0
    %877 = vmatpush1.bf16.msra.mxu0 %v586
    %878 = vmatprep.subr.bf16.mxu0 0
    %879 = vmatpush1.bf16.msra.mxu0 %v587
    %880 = vmatprep.subr.bf16.mxu0 0
    %881 = vmatpush1.bf16.msra.mxu0 %v588
    %882 = vmatprep.subr.bf16.mxu0 0
    %883 = vmatpush1.bf16.msra.mxu0 %v589
    %884 = vmatprep.subr.bf16.mxu0 0
    %885 = vmatpush1.bf16.msra.mxu0 %v590
    %886 = vmatprep.subr.bf16.mxu0 0
    %887 = vmatpush1.bf16.msra.mxu0 %v591
    %888 = vmatprep.subr.bf16.mxu0 0
    %889 = vmatpush1.bf16.msra.mxu0 %v592
    %890 = vmatprep.subr.bf16.mxu0 0
    %891 = vmatpush1.bf16.msra.mxu0 %v593
    %892 = vmatprep.subr.bf16.mxu0 0
    %893 = vmatpush1.bf16.msra.mxu0 0
    %894 = vmatprep.subr.bf16.mxu0 0
    %895 = vmatpush1.bf16.msra.mxu0 0
    %896 = vmatprep.subr.bf16.mxu0 0
    %897 = vmatpush1.bf16.msra.mxu0 0
    %898 = vmatprep.subr.bf16.mxu0 0
    %899 = vmatpush1.bf16.msra.mxu0 0
    %900 = vmatprep.subr.bf16.mxu0 0
    %901 = vmatpush1.bf16.msra.mxu0 0
    %902 = vmatprep.subr.bf16.mxu0 0
    %903 = vmatpush1.bf16.msra.mxu0 0
    %904 = vmatprep.subr.bf16.mxu0 0
    %905 = vmatpush1.bf16.msra.mxu0 0
    %906 = vmatprep.subr.bf16.mxu0 0
    %907 = vmatpush1.bf16.msra.mxu0 0
    %908 = vmatprep.mubr.bf16.mxu0 0
    %909 = vmatmul.mubr.bf16.gmra.mrb[0].mxu0 %v503
    %v910 = vpop.f32.mrb[0].mxu0
    %v911 = vadd.f32 %v595, %v910
    %v912 = vpop.f32.mrb[0].mxu0
    %v913 = vpop.f32.mrb[0].mxu0
    %v914 = vpop.f32.mrb[0].mxu0
    %915 = vdwg.mxu0
    %v916 = vmul.f32 %v631, 0.5
    %v917 = vmul.f32 %v671, 0.5
    %v918 = vmul.f32 %v711, 0.5
    %v919 = vmul.f32 %v751, 0.5
    %v920 = vmul.f32 %v791, 0.5
    %v921 = vmul.f32 %v831, 0.5
    %v922 = vmul.f32 %v871, 0.5
    %v923 = vmul.f32 %v911, 0.5
    %v924 = vmul.f32 %v631, 0.70710677
    %v925 = vmul.f32 %v671, 0.70710677
    %v926 = vmul.f32 %v711, 0.70710677
    %v927 = vmul.f32 %v751, 0.70710677
    %v928 = vmul.f32 %v791, 0.70710677
    %v929 = vmul.f32 %v831, 0.70710677
    %v930 = vmul.f32 %v871, 0.70710677
    %v931 = vmul.f32 %v911, 0.70710677
    %v932 = verf.f32.pop %v924
    %v933 = verf.f32.pop %v925
    %v934 = verf.f32.pop %v926
    %v935 = verf.f32.pop %v927
    %v936 = verf.f32.pop %v928
    %v937 = verf.f32.pop %v929
    %v938 = verf.f32.pop %v930
    %v939 = verf.f32.pop %v931
    %v940 = vadd.f32 %v932, 1.0
    %v941 = vadd.f32 %v933, 1.0
    %v942 = vadd.f32 %v934, 1.0
    %v943 = vadd.f32 %v935, 1.0
    %v944 = vadd.f32 %v936, 1.0
    %v945 = vadd.f32 %v937, 1.0
    %v946 = vadd.f32 %v938, 1.0
    %v947 = vadd.f32 %v939, 1.0
    %v948 = vmul.f32 %v916, %v940
    %v949 = vmul.f32 %v917, %v941
    %v950 = vmul.f32 %v918, %v942
    %v951 = vmul.f32 %v919, %v943
    %v952 = vmul.f32 %v920, %v944
    %v953 = vmul.f32 %v921, %v945
    %v954 = vmul.f32 %v922, %v946
    %v955 = vmul.f32 %v923, %v947
    %v956 = vpack.c.bf16 %v948, %v948
    %v957 = vpack.c.bf16 %v949, %v949
    %v958 = vpack.c.bf16 %v950, %v950
    %v959 = vpack.c.bf16 %v951, %v951
    %v960 = vpack.c.bf16 %v952, %v952
    %v961 = vpack.c.bf16 %v953, %v953
    %v962 = vpack.c.bf16 %v954, %v954
    %v963 = vpack.c.bf16 %v955, %v955
    %s964 = sshll.u32 %s68, 4
    %965 = dma.done %s506, %s964
    %v966 = vld [vmem:[#allocation3] sm:$0xff]
    %v967 = vld [vmem:[#allocation3 + $0x8] sm:$0xff]
    %v968 = vld [vmem:[#allocation3 + $0x10] sm:$0xff]
    %v969 = vld [vmem:[#allocation3 + $0x18] sm:$0xff]
    %v970 = vld [vmem:[#allocation3 + $0x20] sm:$0xff]
    %v971 = vld [vmem:[#allocation3 + $0x28] sm:$0xff]
    %v972 = vld [vmem:[#allocation3 + $0x30] sm:$0xff]
    %v973 = vld [vmem:[#allocation3 + $0x38] sm:$0xff]
    %v974 = vld [vmem:[#allocation3 + $0x40] sm:$0xff]
    %v975 = vld [vmem:[#allocation3 + $0x48] sm:$0xff]
    %v976 = vld [vmem:[#allocation3 + $0x50] sm:$0xff]
    %v977 = vld [vmem:[#allocation3 + $0x58] sm:$0xff]
    %v978 = vld [vmem:[#allocation3 + $0x60] sm:$0xff]
    %v979 = vld [vmem:[#allocation3 + $0x68] sm:$0xff]
    %v980 = vld [vmem:[#allocation3 + $0x70] sm:$0xff]
    %v981 = vld [vmem:[#allocation3 + $0x78] sm:$0xff]
    %v982 = vld [vmem:[#allocation3 + $0x80] sm:$0xff]
    %v983 = vld [vmem:[#allocation3 + $0x88] sm:$0xff]
    %v984 = vld [vmem:[#allocation3 + $0x90] sm:$0xff]
    %v985 = vld [vmem:[#allocation3 + $0x98] sm:$0xff]
    %v986 = vld [vmem:[#allocation3 + $0xa0] sm:$0xff]
    %v987 = vld [vmem:[#allocation3 + $0xa8] sm:$0xff]
    %v988 = vld [vmem:[#allocation3 + $0xb0] sm:$0xff]
    %v989 = vld [vmem:[#allocation3 + $0xb8] sm:$0xff]
    %v990 = vld [vmem:[#allocation3 + $0xc0] sm:$0xff]
    %v991 = vld [vmem:[#allocation3 + $0xc8] sm:$0xff]
    %v992 = vld [vmem:[#allocation3 + $0xd0] sm:$0xff]
    %v993 = vld [vmem:[#allocation3 + $0xd8] sm:$0xff]
    %v994 = vld [vmem:[#allocation3 + $0xe0] sm:$0xff]
    %v995 = vld [vmem:[#allocation3 + $0xe8] sm:$0xff]
    %v996 = vld [vmem:[#allocation3 + $0xf0] sm:$0xff]
    %v997 = vld [vmem:[#allocation3 + $0xf8] sm:$0xff]
    %v998 = vld [vmem:[#allocation3 + $0x100] sm:$0xff]
    %v999 = vld [vmem:[#allocation3 + $0x108] sm:$0xff]
    %v1000 = vld [vmem:[#allocation3 + $0x110] sm:$0xff]
    %v1001 = vld [vmem:[#allocation3 + $0x118] sm:$0xff]
    %v1002 = vld [vmem:[#allocation3 + $0x120] sm:$0xff]
    %v1003 = vld [vmem:[#allocation3 + $0x128] sm:$0xff]
    %v1004 = vld [vmem:[#allocation3 + $0x130] sm:$0xff]
    %v1005 = vld [vmem:[#allocation3 + $0x138] sm:$0xff]
    %v1006 = vld [vmem:[#allocation3 + $0x140] sm:$0xff]
    %v1007 = vld [vmem:[#allocation3 + $0x148] sm:$0xff]
    %v1008 = vld [vmem:[#allocation3 + $0x150] sm:$0xff]
    %v1009 = vld [vmem:[#allocation3 + $0x158] sm:$0xff]
    %v1010 = vld [vmem:[#allocation3 + $0x160] sm:$0xff]
    %v1011 = vld [vmem:[#allocation3 + $0x168] sm:$0xff]
    %v1012 = vld [vmem:[#allocation3 + $0x170] sm:$0xff]
    %v1013 = vld [vmem:[#allocation3 + $0x178] sm:$0xff]
    %v1014 = vld [vmem:[#allocation3 + $0x180] sm:$0xff]
    %v1015 = vld [vmem:[#allocation3 + $0x188] sm:$0xff]
    %v1016 = vld [vmem:[#allocation3 + $0x190] sm:$0xff]
    %v1017 = vld [vmem:[#allocation3 + $0x198] sm:$0xff]
    %v1018 = vld [vmem:[#allocation3 + $0x1a0] sm:$0xff]
    %v1019 = vld [vmem:[#allocation3 + $0x1a8] sm:$0xff]
    %v1020 = vld [vmem:[#allocation3 + $0x1b0] sm:$0xff]
    %v1021 = vld [vmem:[#allocation3 + $0x1b8] sm:$0xff]
    %v1022 = vld [vmem:[#allocation3 + $0x1c0] sm:$0xff]
    %v1023 = vld [vmem:[#allocation3 + $0x1c8] sm:$0xff]
    %v1024 = vld [vmem:[#allocation3 + $0x1d0] sm:$0xff]
    %v1025 = vld [vmem:[#allocation3 + $0x1d8] sm:$0xff]
    %v1026 = vld [vmem:[#allocation3 + $0x1e0] sm:$0xff]
    %v1027 = vld [vmem:[#allocation3 + $0x1e8] sm:$0xff]
    %v1028 = vld [vmem:[#allocation3 + $0x1f0] sm:$0xff]
    %v1029 = vld [vmem:[#allocation3 + $0x1f8] sm:$0xff]
    %1030 = vmatprep.subr.bf16.mxu0 0
    %1031 = vmatpush1.bf16.msra.mxu0 %v966
    %1032 = vmatprep.subr.bf16.mxu0 0
    %1033 = vmatpush1.bf16.msra.mxu0 %v967
    %1034 = vmatprep.subr.bf16.mxu0 0
    %1035 = vmatpush1.bf16.msra.mxu0 %v968
    %1036 = vmatprep.subr.bf16.mxu0 0
    %1037 = vmatpush1.bf16.msra.mxu0 %v969
    %1038 = vmatprep.subr.bf16.mxu0 0
    %1039 = vmatpush1.bf16.msra.mxu0 %v970
    %1040 = vmatprep.subr.bf16.mxu0 0
    %1041 = vmatpush1.bf16.msra.mxu0 %v971
    %1042 = vmatprep.subr.bf16.mxu0 0
    %1043 = vmatpush1.bf16.msra.mxu0 %v972
    %1044 = vmatprep.subr.bf16.mxu0 0
    %1045 = vmatpush1.bf16.msra.mxu0 %v973
    %1046 = vmatprep.subr.bf16.mxu0 0
    %1047 = vmatpush1.bf16.msra.mxu0 0
    %1048 = vmatprep.subr.bf16.mxu0 0
    %1049 = vmatpush1.bf16.msra.mxu0 0
    %1050 = vmatprep.subr.bf16.mxu0 0
    %1051 = vmatpush1.bf16.msra.mxu0 0
    %1052 = vmatprep.subr.bf16.mxu0 0
    %1053 = vmatpush1.bf16.msra.mxu0 0
    %1054 = vmatprep.subr.bf16.mxu0 0
    %1055 = vmatpush1.bf16.msra.mxu0 0
    %1056 = vmatprep.subr.bf16.mxu0 0
    %1057 = vmatpush1.bf16.msra.mxu0 0
    %1058 = vmatprep.subr.bf16.mxu0 0
    %1059 = vmatpush1.bf16.msra.mxu0 0
    %1060 = vmatprep.subr.bf16.mxu0 0
    %1061 = vmatpush1.bf16.msra.mxu0 0
    %1062 = vmatprep.mubr.bf16.mxu0 0
    %1063 = vmatmul.mubr.bf16.gmra.mrb[0].mxu0 %v956
    %v1064 = vpop.f32.mrb[0].mxu0
    %v1065 = vadd.f32 0.0, %v1064
    %v1066 = vpop.f32.mrb[0].mxu0
    %v1067 = vpop.f32.mrb[0].mxu0
    %v1068 = vpop.f32.mrb[0].mxu0
    %1069 = vdwg.mxu0
    %1070 = vmatprep.subr.bf16.mxu0 0
    %1071 = vmatpush1.bf16.msra.mxu0 %v974
    %1072 = vmatprep.subr.bf16.mxu0 0
    %1073 = vmatpush1.bf16.msra.mxu0 %v975
    %1074 = vmatprep.subr.bf16.mxu0 0
    %1075 = vmatpush1.bf16.msra.mxu0 %v976
    %1076 = vmatprep.subr.bf16.mxu0 0
    %1077 = vmatpush1.bf16.msra.mxu0 %v977
    %1078 = vmatprep.subr.bf16.mxu0 0
    %1079 = vmatpush1.bf16.msra.mxu0 %v978
    %1080 = vmatprep.subr.bf16.mxu0 0
    %1081 = vmatpush1.bf16.msra.mxu0 %v979
    %1082 = vmatprep.subr.bf16.mxu0 0
    %1083 = vmatpush1.bf16.msra.mxu0 %v980
    %1084 = vmatprep.subr.bf16.mxu0 0
    %1085 = vmatpush1.bf16.msra.mxu0 %v981
    %1086 = vmatprep.subr.bf16.mxu0 0
    %1087 = vmatpush1.bf16.msra.mxu0 0
    %1088 = vmatprep.subr.bf16.mxu0 0
    %1089 = vmatpush1.bf16.msra.mxu0 0
    %1090 = vmatprep.subr.bf16.mxu0 0
    %1091 = vmatpush1.bf16.msra.mxu0 0
    %1092 = vmatprep.subr.bf16.mxu0 0
    %1093 = vmatpush1.bf16.msra.mxu0 0
    %1094 = vmatprep.subr.bf16.mxu0 0
    %1095 = vmatpush1.bf16.msra.mxu0 0
    %1096 = vmatprep.subr.bf16.mxu0 0
    %1097 = vmatpush1.bf16.msra.mxu0 0
    %1098 = vmatprep.subr.bf16.mxu0 0
    %1099 = vmatpush1.bf16.msra.mxu0 0
    %1100 = vmatprep.subr.bf16.mxu0 0
    %1101 = vmatpush1.bf16.msra.mxu0 0
    %1102 = vmatprep.mubr.bf16.mxu0 0
    %1103 = vmatmul.mubr.bf16.gmra.mrb[0].mxu0 %v957
    %v1104 = vpop.f32.mrb[0].mxu0
    %v1105 = vadd.f32 0.0, %v1104
    %v1106 = vpop.f32.mrb[0].mxu0
    %v1107 = vpop.f32.mrb[0].mxu0
    %v1108 = vpop.f32.mrb[0].mxu0
    %1109 = vdwg.mxu0
    %1110 = vmatprep.subr.bf16.mxu0 0
    %1111 = vmatpush1.bf16.msra.mxu0 %v982
    %1112 = vmatprep.subr.bf16.mxu0 0
    %1113 = vmatpush1.bf16.msra.mxu0 %v983
    %1114 = vmatprep.subr.bf16.mxu0 0
    %1115 = vmatpush1.bf16.msra.mxu0 %v984
    %1116 = vmatprep.subr.bf16.mxu0 0
    %1117 = vmatpush1.bf16.msra.mxu0 %v985
    %1118 = vmatprep.subr.bf16.mxu0 0
    %1119 = vmatpush1.bf16.msra.mxu0 %v986
    %1120 = vmatprep.subr.bf16.mxu0 0
    %1121 = vmatpush1.bf16.msra.mxu0 %v987
    %1122 = vmatprep.subr.bf16.mxu0 0
    %1123 = vmatpush1.bf16.msra.mxu0 %v988
    %1124 = vmatprep.subr.bf16.mxu0 0
    %1125 = vmatpush1.bf16.msra.mxu0 %v989
    %1126 = vmatprep.subr.bf16.mxu0 0
    %1127 = vmatpush1.bf16.msra.mxu0 0
    %1128 = vmatprep.subr.bf16.mxu0 0
    %1129 = vmatpush1.bf16.msra.mxu0 0
    %1130 = vmatprep.subr.bf16.mxu0 0
    %1131 = vmatpush1.bf16.msra.mxu0 0
    %1132 = vmatprep.subr.bf16.mxu0 0
    %1133 = vmatpush1.bf16.msra.mxu0 0
    %1134 = vmatprep.subr.bf16.mxu0 0
    %1135 = vmatpush1.bf16.msra.mxu0 0
    %1136 = vmatprep.subr.bf16.mxu0 0
    %1137 = vmatpush1.bf16.msra.mxu0 0
    %1138 = vmatprep.subr.bf16.mxu0 0
    %1139 = vmatpush1.bf16.msra.mxu0 0
    %1140 = vmatprep.subr.bf16.mxu0 0
    %1141 = vmatpush1.bf16.msra.mxu0 0
    %1142 = vmatprep.mubr.bf16.mxu0 0
    %1143 = vmatmul.mubr.bf16.gmra.mrb[0].mxu0 %v958
    %v1144 = vpop.f32.mrb[0].mxu0
    %v1145 = vadd.f32 0.0, %v1144
    %v1146 = vpop.f32.mrb[0].mxu0
    %v1147 = vpop.f32.mrb[0].mxu0
    %v1148 = vpop.f32.mrb[0].mxu0
    %1149 = vdwg.mxu0
    %1150 = vmatprep.subr.bf16.mxu0 0
    %1151 = vmatpush1.bf16.msra.mxu0 %v990
    %1152 = vmatprep.subr.bf16.mxu0 0
    %1153 = vmatpush1.bf16.msra.mxu0 %v991
    %1154 = vmatprep.subr.bf16.mxu0 0
    %1155 = vmatpush1.bf16.msra.mxu0 %v992
    %1156 = vmatprep.subr.bf16.mxu0 0
    %1157 = vmatpush1.bf16.msra.mxu0 %v993
    %1158 = vmatprep.subr.bf16.mxu0 0
    %1159 = vmatpush1.bf16.msra.mxu0 %v994
    %1160 = vmatprep.subr.bf16.mxu0 0
    %1161 = vmatpush1.bf16.msra.mxu0 %v995
    %1162 = vmatprep.subr.bf16.mxu0 0
    %1163 = vmatpush1.bf16.msra.mxu0 %v996
    %1164 = vmatprep.subr.bf16.mxu0 0
    %1165 = vmatpush1.bf16.msra.mxu0 %v997
    %1166 = vmatprep.subr.bf16.mxu0 0
    %1167 = vmatpush1.bf16.msra.mxu0 0
    %1168 = vmatprep.subr.bf16.mxu0 0
    %1169 = vmatpush1.bf16.msra.mxu0 0
    %1170 = vmatprep.subr.bf16.mxu0 0
    %1171 = vmatpush1.bf16.msra.mxu0 0
    %1172 = vmatprep.subr.bf16.mxu0 0
    %1173 = vmatpush1.bf16.msra.mxu0 0
    %1174 = vmatprep.subr.bf16.mxu0 0
    %1175 = vmatpush1.bf16.msra.mxu0 0
    %1176 = vmatprep.subr.bf16.mxu0 0
    %1177 = vmatpush1.bf16.msra.mxu0 0
    %1178 = vmatprep.subr.bf16.mxu0 0
    %1179 = vmatpush1.bf16.msra.mxu0 0
    %1180 = vmatprep.subr.bf16.mxu0 0
    %1181 = vmatpush1.bf16.msra.mxu0 0
    %1182 = vmatprep.mubr.bf16.mxu0 0
    %1183 = vmatmul.mubr.bf16.gmra.mrb[0].mxu0 %v959
    %v1184 = vpop.f32.mrb[0].mxu0
    %v1185 = vadd.f32 0.0, %v1184
    %v1186 = vpop.f32.mrb[0].mxu0
    %v1187 = vpop.f32.mrb[0].mxu0
    %v1188 = vpop.f32.mrb[0].mxu0
    %1189 = vdwg.mxu0
    %1190 = vmatprep.subr.bf16.mxu0 0
    %1191 = vmatpush1.bf16.msra.mxu0 %v998
    %1192 = vmatprep.subr.bf16.mxu0 0
    %1193 = vmatpush1.bf16.msra.mxu0 %v999
    %1194 = vmatprep.subr.bf16.mxu0 0
    %1195 = vmatpush1.bf16.msra.mxu0 %v1000
    %1196 = vmatprep.subr.bf16.mxu0 0
    %1197 = vmatpush1.bf16.msra.mxu0 %v1001
    %1198 = vmatprep.subr.bf16.mxu0 0
    %1199 = vmatpush1.bf16.msra.mxu0 %v1002
    %1200 = vmatprep.subr.bf16.mxu0 0
    %1201 = vmatpush1.bf16.msra.mxu0 %v1003
    %1202 = vmatprep.subr.bf16.mxu0 0
    %1203 = vmatpush1.bf16.msra.mxu0 %v1004
    %1204 = vmatprep.subr.bf16.mxu0 0
    %1205 = vmatpush1.bf16.msra.mxu0 %v1005
    %1206 = vmatprep.subr.bf16.mxu0 0
    %1207 = vmatpush1.bf16.msra.mxu0 0
    %1208 = vmatprep.subr.bf16.mxu0 0
    %1209 = vmatpush1.bf16.msra.mxu0 0
    %1210 = vmatprep.subr.bf16.mxu0 0
    %1211 = vmatpush1.bf16.msra.mxu0 0
    %1212 = vmatprep.subr.bf16.mxu0 0
    %1213 = vmatpush1.bf16.msra.mxu0 0
    %1214 = vmatprep.subr.bf16.mxu0 0
    %1215 = vmatpush1.bf16.msra.mxu0 0
    %1216 = vmatprep.subr.bf16.mxu0 0
    %1217 = vmatpush1.bf16.msra.mxu0 0
    %1218 = vmatprep.subr.bf16.mxu0 0
    %1219 = vmatpush1.bf16.msra.mxu0 0
    %1220 = vmatprep.subr.bf16.mxu0 0
    %1221 = vmatpush1.bf16.msra.mxu0 0
    %1222 = vmatprep.mubr.bf16.mxu0 0
    %1223 = vmatmul.mubr.bf16.gmra.mrb[0].mxu0 %v960
    %v1224 = vpop.f32.mrb[0].mxu0
    %v1225 = vadd.f32 0.0, %v1224
    %v1226 = vpop.f32.mrb[0].mxu0
    %v1227 = vpop.f32.mrb[0].mxu0
    %v1228 = vpop.f32.mrb[0].mxu0
    %1229 = vdwg.mxu0
    %1230 = vmatprep.subr.bf16.mxu0 0
    %1231 = vmatpush1.bf16.msra.mxu0 %v1006
    %1232 = vmatprep.subr.bf16.mxu0 0
    %1233 = vmatpush1.bf16.msra.mxu0 %v1007
    %1234 = vmatprep.subr.bf16.mxu0 0
    %1235 = vmatpush1.bf16.msra.mxu0 %v1008
    %1236 = vmatprep.subr.bf16.mxu0 0
    %1237 = vmatpush1.bf16.msra.mxu0 %v1009
    %1238 = vmatprep.subr.bf16.mxu0 0
    %1239 = vmatpush1.bf16.msra.mxu0 %v1010
    %1240 = vmatprep.subr.bf16.mxu0 0
    %1241 = vmatpush1.bf16.msra.mxu0 %v1011
    %1242 = vmatprep.subr.bf16.mxu0 0
    %1243 = vmatpush1.bf16.msra.mxu0 %v1012
    %1244 = vmatprep.subr.bf16.mxu0 0
    %1245 = vmatpush1.bf16.msra.mxu0 %v1013
    %1246 = vmatprep.subr.bf16.mxu0 0
    %1247 = vmatpush1.bf16.msra.mxu0 0
    %1248 = vmatprep.subr.bf16.mxu0 0
    %1249 = vmatpush1.bf16.msra.mxu0 0
    %1250 = vmatprep.subr.bf16.mxu0 0
    %1251 = vmatpush1.bf16.msra.mxu0 0
    %1252 = vmatprep.subr.bf16.mxu0 0
    %1253 = vmatpush1.bf16.msra.mxu0 0
    %1254 = vmatprep.subr.bf16.mxu0 0
    %1255 = vmatpush1.bf16.msra.mxu0 0
    %1256 = vmatprep.subr.bf16.mxu0 0
    %1257 = vmatpush1.bf16.msra.mxu0 0
    %1258 = vmatprep.subr.bf16.mxu0 0
    %1259 = vmatpush1.bf16.msra.mxu0 0
    %1260 = vmatprep.subr.bf16.mxu0 0
    %1261 = vmatpush1.bf16.msra.mxu0 0
    %1262 = vmatprep.mubr.bf16.mxu0 0
    %1263 = vmatmul.mubr.bf16.gmra.mrb[0].mxu0 %v961
    %v1264 = vpop.f32.mrb[0].mxu0
    %v1265 = vadd.f32 0.0, %v1264
    %v1266 = vpop.f32.mrb[0].mxu0
    %v1267 = vpop.f32.mrb[0].mxu0
    %v1268 = vpop.f32.mrb[0].mxu0
    %1269 = vdwg.mxu0
    %1270 = vmatprep.subr.bf16.mxu0 0
    %1271 = vmatpush1.bf16.msra.mxu0 %v1014
    %1272 = vmatprep.subr.bf16.mxu0 0
    %1273 = vmatpush1.bf16.msra.mxu0 %v1015
    %1274 = vmatprep.subr.bf16.mxu0 0
    %1275 = vmatpush1.bf16.msra.mxu0 %v1016
    %1276 = vmatprep.subr.bf16.mxu0 0
    %1277 = vmatpush1.bf16.msra.mxu0 %v1017
    %1278 = vmatprep.subr.bf16.mxu0 0
    %1279 = vmatpush1.bf16.msra.mxu0 %v1018
    %1280 = vmatprep.subr.bf16.mxu0 0
    %1281 = vmatpush1.bf16.msra.mxu0 %v1019
    %1282 = vmatprep.subr.bf16.mxu0 0
    %1283 = vmatpush1.bf16.msra.mxu0 %v1020
    %1284 = vmatprep.subr.bf16.mxu0 0
    %1285 = vmatpush1.bf16.msra.mxu0 %v1021
    %1286 = vmatprep.subr.bf16.mxu0 0
    %1287 = vmatpush1.bf16.msra.mxu0 0
    %1288 = vmatprep.subr.bf16.mxu0 0
    %1289 = vmatpush1.bf16.msra.mxu0 0
    %1290 = vmatprep.subr.bf16.mxu0 0
    %1291 = vmatpush1.bf16.msra.mxu0 0
    %1292 = vmatprep.subr.bf16.mxu0 0
    %1293 = vmatpush1.bf16.msra.mxu0 0
    %1294 = vmatprep.subr.bf16.mxu0 0
    %1295 = vmatpush1.bf16.msra.mxu0 0
    %1296 = vmatprep.subr.bf16.mxu0 0
    %1297 = vmatpush1.bf16.msra.mxu0 0
    %1298 = vmatprep.subr.bf16.mxu0 0
    %1299 = vmatpush1.bf16.msra.mxu0 0
    %1300 = vmatprep.subr.bf16.mxu0 0
    %1301 = vmatpush1.bf16.msra.mxu0 0
    %1302 = vmatprep.mubr.bf16.mxu0 0
    %1303 = vmatmul.mubr.bf16.gmra.mrb[0].mxu0 %v962
    %v1304 = vpop.f32.mrb[0].mxu0
    %v1305 = vadd.f32 0.0, %v1304
    %v1306 = vpop.f32.mrb[0].mxu0
    %v1307 = vpop.f32.mrb[0].mxu0
    %v1308 = vpop.f32.mrb[0].mxu0
    %1309 = vdwg.mxu0
    %1310 = vmatprep.subr.bf16.mxu0 0
    %1311 = vmatpush1.bf16.msra.mxu0 %v1022
    %1312 = vmatprep.subr.bf16.mxu0 0
    %1313 = vmatpush1.bf16.msra.mxu0 %v1023
    %1314 = vmatprep.subr.bf16.mxu0 0
    %1315 = vmatpush1.bf16.msra.mxu0 %v1024
    %1316 = vmatprep.subr.bf16.mxu0 0
    %1317 = vmatpush1.bf16.msra.mxu0 %v1025
    %1318 = vmatprep.subr.bf16.mxu0 0
    %1319 = vmatpush1.bf16.msra.mxu0 %v1026
    %1320 = vmatprep.subr.bf16.mxu0 0
    %1321 = vmatpush1.bf16.msra.mxu0 %v1027
    %1322 = vmatprep.subr.bf16.mxu0 0
    %1323 = vmatpush1.bf16.msra.mxu0 %v1028
    %1324 = vmatprep.subr.bf16.mxu0 0
    %1325 = vmatpush1.bf16.msra.mxu0 %v1029
    %1326 = vmatprep.subr.bf16.mxu0 0
    %1327 = vmatpush1.bf16.msra.mxu0 0
    %1328 = vmatprep.subr.bf16.mxu0 0
    %1329 = vmatpush1.bf16.msra.mxu0 0
    %1330 = vmatprep.subr.bf16.mxu0 0
    %1331 = vmatpush1.bf16.msra.mxu0 0
    %1332 = vmatprep.subr.bf16.mxu0 0
    %1333 = vmatpush1.bf16.msra.mxu0 0
    %1334 = vmatprep.subr.bf16.mxu0 0
    %1335 = vmatpush1.bf16.msra.mxu0 0
    %1336 = vmatprep.subr.bf16.mxu0 0
    %1337 = vmatpush1.bf16.msra.mxu0 0
    %1338 = vmatprep.subr.bf16.mxu0 0
    %1339 = vmatpush1.bf16.msra.mxu0 0
    %1340 = vmatprep.subr.bf16.mxu0 0
    %1341 = vmatpush1.bf16.msra.mxu0 0
    %1342 = vmatprep.mubr.bf16.mxu0 0
    %1343 = vmatmul.mubr.bf16.gmra.mrb[0].mxu0 %v963
    %v1344 = vpop.f32.mrb[0].mxu0
    %v1345 = vadd.f32 0.0, %v1344
    %v1346 = vpop.f32.mrb[0].mxu0
    %v1347 = vpop.f32.mrb[0].mxu0
    %v1348 = vpop.f32.mrb[0].mxu0
    %1349 = vdwg.mxu0
    %v1350 = vld [vmem:[%s2] sm:$0x1]
    %v1352 = vlaneseq
    %v1353 = vshrl.u32 %v1352, 7
    %v1354 = vsub.s32 0, %v1353
    %v1355 = vrot.slane %v1350, %v1354
    %v1357 = vadd.f32 %v1065, %v1355
    %v1358 = vadd.f32 %v1105, %v1355
    %v1359 = vadd.f32 %v1145, %v1355
    %v1360 = vadd.f32 %v1185, %v1355
    %v1361 = vadd.f32 %v1225, %v1355
    %v1362 = vadd.f32 %v1265, %v1355
    %v1363 = vadd.f32 %v1305, %v1355
    %v1364 = vadd.f32 %v1345, %v1355
    %v1373 = vrot.slane %v1358, 7
    %vm1374 = vcmask 1041409
    %v1375 = vsel %vm1374, %v1373, %v1357
    %v1376 = vrot.slane %v1359, 6
    %vm1377 = vcmask 1042434
    %v1378 = vsel %vm1377, %v1376, %v1375
    %v1379 = vrot.slane %v1360, 5
    %vm1380 = vcmask 1043459
    %v1381 = vsel %vm1380, %v1379, %v1378
    %v1382 = vrot.slane %v1361, 4
    %vm1383 = vcmask 1044484
    %v1384 = vsel %vm1383, %v1382, %v1381
    %v1385 = vrot.slane %v1362, 3
    %vm1386 = vcmask 1045509
    %v1387 = vsel %vm1386, %v1385, %v1384
    %v1388 = vrot.slane %v1363, 2
    %vm1389 = vcmask 1046534
    %v1390 = vsel %vm1389, %v1388, %v1387
    %v1391 = vrot.slane %v1364, 1
    %vm1392 = vcmask 1047559
    %v1393 = vsel %vm1392, %v1391, %v1390
    %1395 = vst [vmem:[#allocation6] sm:$0xff] %v1393
    %s1396 = sshll.u32 %s68, 4
    %1397 = dma.done %s518, %s1396
    %v1398 = vld [vmem:[#allocation4] sm:$0xff]
    %v1399 = vld [vmem:[#allocation4 + $0x8] sm:$0xff]
    %v1400 = vld [vmem:[#allocation4 + $0x10] sm:$0xff]
    %v1401 = vld [vmem:[#allocation4 + $0x18] sm:$0xff]
    %v1402 = vld [vmem:[#allocation4 + $0x20] sm:$0xff]
    %v1403 = vld [vmem:[#allocation4 + $0x28] sm:$0xff]
    %v1404 = vld [vmem:[#allocation4 + $0x30] sm:$0xff]
    %v1405 = vld [vmem:[#allocation4 + $0x38] sm:$0xff]
    %v1406 = vld [vmem:[#allocation4 + $0x40] sm:$0xff]
    %v1407 = vld [vmem:[#allocation4 + $0x48] sm:$0xff]
    %v1408 = vld [vmem:[#allocation4 + $0x50] sm:$0xff]
    %v1409 = vld [vmem:[#allocation4 + $0x58] sm:$0xff]
    %v1410 = vld [vmem:[#allocation4 + $0x60] sm:$0xff]
    %v1411 = vld [vmem:[#allocation4 + $0x68] sm:$0xff]
    %v1412 = vld [vmem:[#allocation4 + $0x70] sm:$0xff]
    %v1413 = vld [vmem:[#allocation4 + $0x78] sm:$0xff]
    %v1414 = vld [vmem:[#allocation4 + $0x80] sm:$0xff]
    %v1415 = vld [vmem:[#allocation4 + $0x88] sm:$0xff]
    %v1416 = vld [vmem:[#allocation4 + $0x90] sm:$0xff]
    %v1417 = vld [vmem:[#allocation4 + $0x98] sm:$0xff]
    %v1418 = vld [vmem:[#allocation4 + $0xa0] sm:$0xff]
    %v1419 = vld [vmem:[#allocation4 + $0xa8] sm:$0xff]
    %v1420 = vld [vmem:[#allocation4 + $0xb0] sm:$0xff]
    %v1421 = vld [vmem:[#allocation4 + $0xb8] sm:$0xff]
    %v1422 = vld [vmem:[#allocation4 + $0xc0] sm:$0xff]
    %v1423 = vld [vmem:[#allocation4 + $0xc8] sm:$0xff]
    %v1424 = vld [vmem:[#allocation4 + $0xd0] sm:$0xff]
    %v1425 = vld [vmem:[#allocation4 + $0xd8] sm:$0xff]
    %v1426 = vld [vmem:[#allocation4 + $0xe0] sm:$0xff]
    %v1427 = vld [vmem:[#allocation4 + $0xe8] sm:$0xff]
    %v1428 = vld [vmem:[#allocation4 + $0xf0] sm:$0xff]
    %v1429 = vld [vmem:[#allocation4 + $0xf8] sm:$0xff]
    %v1430 = vld [vmem:[#allocation4 + $0x100] sm:$0xff]
    %v1431 = vld [vmem:[#allocation4 + $0x108] sm:$0xff]
    %v1432 = vld [vmem:[#allocation4 + $0x110] sm:$0xff]
    %v1433 = vld [vmem:[#allocation4 + $0x118] sm:$0xff]
    %v1434 = vld [vmem:[#allocation4 + $0x120] sm:$0xff]
    %v1435 = vld [vmem:[#allocation4 + $0x128] sm:$0xff]
    %v1436 = vld [vmem:[#allocation4 + $0x130] sm:$0xff]
    %v1437 = vld [vmem:[#allocation4 + $0x138] sm:$0xff]
    %v1438 = vld [vmem:[#allocation4 + $0x140] sm:$0xff]
    %v1439 = vld [vmem:[#allocation4 + $0x148] sm:$0xff]
    %v1440 = vld [vmem:[#allocation4 + $0x150] sm:$0xff]
    %v1441 = vld [vmem:[#allocation4 + $0x158] sm:$0xff]
    %v1442 = vld [vmem:[#allocation4 + $0x160] sm:$0xff]
    %v1443 = vld [vmem:[#allocation4 + $0x168] sm:$0xff]
    %v1444 = vld [vmem:[#allocation4 + $0x170] sm:$0xff]
    %v1445 = vld [vmem:[#allocation4 + $0x178] sm:$0xff]
    %v1446 = vld [vmem:[#allocation4 + $0x180] sm:$0xff]
    %v1447 = vld [vmem:[#allocation4 + $0x188] sm:$0xff]
    %v1448 = vld [vmem:[#allocation4 + $0x190] sm:$0xff]
    %v1449 = vld [vmem:[#allocation4 + $0x198] sm:$0xff]
    %v1450 = vld [vmem:[#allocation4 + $0x1a0] sm:$0xff]
    %v1451 = vld [vmem:[#allocation4 + $0x1a8] sm:$0xff]
    %v1452 = vld [vmem:[#allocation4 + $0x1b0] sm:$0xff]
    %v1453 = vld [vmem:[#allocation4 + $0x1b8] sm:$0xff]
    %v1454 = vld [vmem:[#allocation4 + $0x1c0] sm:$0xff]
    %v1455 = vld [vmem:[#allocation4 + $0x1c8] sm:$0xff]
    %v1456 = vld [vmem:[#allocation4 + $0x1d0] sm:$0xff]
    %v1457 = vld [vmem:[#allocation4 + $0x1d8] sm:$0xff]
    %v1458 = vld [vmem:[#allocation4 + $0x1e0] sm:$0xff]
    %v1459 = vld [vmem:[#allocation4 + $0x1e8] sm:$0xff]
    %v1460 = vld [vmem:[#allocation4 + $0x1f0] sm:$0xff]
    %v1461 = vld [vmem:[#allocation4 + $0x1f8] sm:$0xff]
    %1462 = vmatprep.subr.bf16.mxu0 0
    %1463 = vmatpush1.bf16.msra.mxu0 %v1398
    %1464 = vmatprep.subr.bf16.mxu0 0
    %1465 = vmatpush1.bf16.msra.mxu0 %v1399
    %1466 = vmatprep.subr.bf16.mxu0 0
    %1467 = vmatpush1.bf16.msra.mxu0 %v1400
    %1468 = vmatprep.subr.bf16.mxu0 0
    %1469 = vmatpush1.bf16.msra.mxu0 %v1401
    %1470 = vmatprep.subr.bf16.mxu0 0
    %1471 = vmatpush1.bf16.msra.mxu0 %v1402
    %1472 = vmatprep.subr.bf16.mxu0 0
    %1473 = vmatpush1.bf16.msra.mxu0 %v1403
    %1474 = vmatprep.subr.bf16.mxu0 0
    %1475 = vmatpush1.bf16.msra.mxu0 %v1404
    %1476 = vmatprep.subr.bf16.mxu0 0
    %1477 = vmatpush1.bf16.msra.mxu0 %v1405
    %1478 = vmatprep.subr.bf16.mxu0 0
    %1479 = vmatpush1.bf16.msra.mxu0 0
    %1480 = vmatprep.subr.bf16.mxu0 0
    %1481 = vmatpush1.bf16.msra.mxu0 0
    %1482 = vmatprep.subr.bf16.mxu0 0
    %1483 = vmatpush1.bf16.msra.mxu0 0
    %1484 = vmatprep.subr.bf16.mxu0 0
    %1485 = vmatpush1.bf16.msra.mxu0 0
    %1486 = vmatprep.subr.bf16.mxu0 0
    %1487 = vmatpush1.bf16.msra.mxu0 0
    %1488 = vmatprep.subr.bf16.mxu0 0
    %1489 = vmatpush1.bf16.msra.mxu0 0
    %1490 = vmatprep.subr.bf16.mxu0 0
    %1491 = vmatpush1.bf16.msra.mxu0 0
    %1492 = vmatprep.subr.bf16.mxu0 0
    %1493 = vmatpush1.bf16.msra.mxu0 0
    %1494 = vmatprep.mubr.bf16.mxu0 0
    %1495 = vmatmul.mubr.bf16.gmra.mrb[0].mxu0 %v956
    %v1496 = vpop.f32.mrb[0].mxu0
    %v1497 = vadd.f32 0.0, %v1496
    %v1498 = vpop.f32.mrb[0].mxu0
    %v1499 = vpop.f32.mrb[0].mxu0
    %v1500 = vpop.f32.mrb[0].mxu0
    %1501 = vdwg.mxu0
    %1502 = vmatprep.subr.bf16.mxu0 0
    %1503 = vmatpush1.bf16.msra.mxu0 %v1406
    %1504 = vmatprep.subr.bf16.mxu0 0
    %1505 = vmatpush1.bf16.msra.mxu0 %v1407
    %1506 = vmatprep.subr.bf16.mxu0 0
    %1507 = vmatpush1.bf16.msra.mxu0 %v1408
    %1508 = vmatprep.subr.bf16.mxu0 0
    %1509 = vmatpush1.bf16.msra.mxu0 %v1409
    %1510 = vmatprep.subr.bf16.mxu0 0
    %1511 = vmatpush1.bf16.msra.mxu0 %v1410
    %1512 = vmatprep.subr.bf16.mxu0 0
    %1513 = vmatpush1.bf16.msra.mxu0 %v1411
    %1514 = vmatprep.subr.bf16.mxu0 0
    %1515 = vmatpush1.bf16.msra.mxu0 %v1412
    %1516 = vmatprep.subr.bf16.mxu0 0
    %1517 = vmatpush1.bf16.msra.mxu0 %v1413
    %1518 = vmatprep.subr.bf16.mxu0 0
    %1519 = vmatpush1.bf16.msra.mxu0 0
    %1520 = vmatprep.subr.bf16.mxu0 0
    %1521 = vmatpush1.bf16.msra.mxu0 0
    %1522 = vmatprep.subr.bf16.mxu0 0
    %1523 = vmatpush1.bf16.msra.mxu0 0
    %1524 = vmatprep.subr.bf16.mxu0 0
    %1525 = vmatpush1.bf16.msra.mxu0 0
    %1526 = vmatprep.subr.bf16.mxu0 0
    %1527 = vmatpush1.bf16.msra.mxu0 0
    %1528 = vmatprep.subr.bf16.mxu0 0
    %1529 = vmatpush1.bf16.msra.mxu0 0
    %1530 = vmatprep.subr.bf16.mxu0 0
    %1531 = vmatpush1.bf16.msra.mxu0 0
    %1532 = vmatprep.subr.bf16.mxu0 0
    %1533 = vmatpush1.bf16.msra.mxu0 0
    %1534 = vmatprep.mubr.bf16.mxu0 0
    %1535 = vmatmul.mubr.bf16.gmra.mrb[0].mxu0 %v957
    %v1536 = vpop.f32.mrb[0].mxu0
    %v1537 = vadd.f32 0.0, %v1536
    %v1538 = vpop.f32.mrb[0].mxu0
    %v1539 = vpop.f32.mrb[0].mxu0
    %v1540 = vpop.f32.mrb[0].mxu0
    %1541 = vdwg.mxu0
    %1542 = vmatprep.subr.bf16.mxu0 0
    %1543 = vmatpush1.bf16.msra.mxu0 %v1414
    %1544 = vmatprep.subr.bf16.mxu0 0
    %1545 = vmatpush1.bf16.msra.mxu0 %v1415
    %1546 = vmatprep.subr.bf16.mxu0 0
    %1547 = vmatpush1.bf16.msra.mxu0 %v1416
    %1548 = vmatprep.subr.bf16.mxu0 0
    %1549 = vmatpush1.bf16.msra.mxu0 %v1417
    %1550 = vmatprep.subr.bf16.mxu0 0
    %1551 = vmatpush1.bf16.msra.mxu0 %v1418
    %1552 = vmatprep.subr.bf16.mxu0 0
    %1553 = vmatpush1.bf16.msra.mxu0 %v1419
    %1554 = vmatprep.subr.bf16.mxu0 0
    %1555 = vmatpush1.bf16.msra.mxu0 %v1420
    %1556 = vmatprep.subr.bf16.mxu0 0
    %1557 = vmatpush1.bf16.msra.mxu0 %v1421
    %1558 = vmatprep.subr.bf16.mxu0 0
    %1559 = vmatpush1.bf16.msra.mxu0 0
    %1560 = vmatprep.subr.bf16.mxu0 0
    %1561 = vmatpush1.bf16.msra.mxu0 0
    %1562 = vmatprep.subr.bf16.mxu0 0
    %1563 = vmatpush1.bf16.msra.mxu0 0
    %1564 = vmatprep.subr.bf16.mxu0 0
    %1565 = vmatpush1.bf16.msra.mxu0 0
    %1566 = vmatprep.subr.bf16.mxu0 0
    %1567 = vmatpush1.bf16.msra.mxu0 0
    %1568 = vmatprep.subr.bf16.mxu0 0
    %1569 = vmatpush1.bf16.msra.mxu0 0
    %1570 = vmatprep.subr.bf16.mxu0 0
    %1571 = vmatpush1.bf16.msra.mxu0 0
    %1572 = vmatprep.subr.bf16.mxu0 0
    %1573 = vmatpush1.bf16.msra.mxu0 0
    %1574 = vmatprep.mubr.bf16.mxu0 0
    %1575 = vmatmul.mubr.bf16.gmra.mrb[0].mxu0 %v958
    %v1576 = vpop.f32.mrb[0].mxu0
    %v1577 = vadd.f32 0.0, %v1576
    %v1578 = vpop.f32.mrb[0].mxu0
    %v1579 = vpop.f32.mrb[0].mxu0
    %v1580 = vpop.f32.mrb[0].mxu0
    %1581 = vdwg.mxu0
    %1582 = vmatprep.subr.bf16.mxu0 0
    %1583 = vmatpush1.bf16.msra.mxu0 %v1422
    %1584 = vmatprep.subr.bf16.mxu0 0
    %1585 = vmatpush1.bf16.msra.mxu0 %v1423
    %1586 = vmatprep.subr.bf16.mxu0 0
    %1587 = vmatpush1.bf16.msra.mxu0 %v1424
    %1588 = vmatprep.subr.bf16.mxu0 0
    %1589 = vmatpush1.bf16.msra.mxu0 %v1425
    %1590 = vmatprep.subr.bf16.mxu0 0
    %1591 = vmatpush1.bf16.msra.mxu0 %v1426
    %1592 = vmatprep.subr.bf16.mxu0 0
    %1593 = vmatpush1.bf16.msra.mxu0 %v1427
    %1594 = vmatprep.subr.bf16.mxu0 0
    %1595 = vmatpush1.bf16.msra.mxu0 %v1428
    %1596 = vmatprep.subr.bf16.mxu0 0
    %1597 = vmatpush1.bf16.msra.mxu0 %v1429
    %1598 = vmatprep.subr.bf16.mxu0 0
    %1599 = vmatpush1.bf16.msra.mxu0 0
    %1600 = vmatprep.subr.bf16.mxu0 0
    %1601 = vmatpush1.bf16.msra.mxu0 0
    %1602 = vmatprep.subr.bf16.mxu0 0
    %1603 = vmatpush1.bf16.msra.mxu0 0
    %1604 = vmatprep.subr.bf16.mxu0 0
    %1605 = vmatpush1.bf16.msra.mxu0 0
    %1606 = vmatprep.subr.bf16.mxu0 0
    %1607 = vmatpush1.bf16.msra.mxu0 0
    %1608 = vmatprep.subr.bf16.mxu0 0
    %1609 = vmatpush1.bf16.msra.mxu0 0
    %1610 = vmatprep.subr.bf16.mxu0 0
    %1611 = vmatpush1.bf16.msra.mxu0 0
    %1612 = vmatprep.subr.bf16.mxu0 0
    %1613 = vmatpush1.bf16.msra.mxu0 0
    %1614 = vmatprep.mubr.bf16.mxu0 0
    %1615 = vmatmul.mubr.bf16.gmra.mrb[0].mxu0 %v959
    %v1616 = vpop.f32.mrb[0].mxu0
    %v1617 = vadd.f32 0.0, %v1616
    %v1618 = vpop.f32.mrb[0].mxu0
    %v1619 = vpop.f32.mrb[0].mxu0
    %v1620 = vpop.f32.mrb[0].mxu0
    %1621 = vdwg.mxu0
    %1622 = vmatprep.subr.bf16.mxu0 0
    %1623 = vmatpush1.bf16.msra.mxu0 %v1430
    %1624 = vmatprep.subr.bf16.mxu0 0
    %1625 = vmatpush1.bf16.msra.mxu0 %v1431
    %1626 = vmatprep.subr.bf16.mxu0 0
    %1627 = vmatpush1.bf16.msra.mxu0 %v1432
    %1628 = vmatprep.subr.bf16.mxu0 0
    %1629 = vmatpush1.bf16.msra.mxu0 %v1433
    %1630 = vmatprep.subr.bf16.mxu0 0
    %1631 = vmatpush1.bf16.msra.mxu0 %v1434
    %1632 = vmatprep.subr.bf16.mxu0 0
    %1633 = vmatpush1.bf16.msra.mxu0 %v1435
    %1634 = vmatprep.subr.bf16.mxu0 0
    %1635 = vmatpush1.bf16.msra.mxu0 %v1436
    %1636 = vmatprep.subr.bf16.mxu0 0
    %1637 = vmatpush1.bf16.msra.mxu0 %v1437
    %1638 = vmatprep.subr.bf16.mxu0 0
    %1639 = vmatpush1.bf16.msra.mxu0 0
    %1640 = vmatprep.subr.bf16.mxu0 0
    %1641 = vmatpush1.bf16.msra.mxu0 0
    %1642 = vmatprep.subr.bf16.mxu0 0
    %1643 = vmatpush1.bf16.msra.mxu0 0
    %1644 = vmatprep.subr.bf16.mxu0 0
    %1645 = vmatpush1.bf16.msra.mxu0 0
    %1646 = vmatprep.subr.bf16.mxu0 0
    %1647 = vmatpush1.bf16.msra.mxu0 0
    %1648 = vmatprep.subr.bf16.mxu0 0
    %1649 = vmatpush1.bf16.msra.mxu0 0
    %1650 = vmatprep.subr.bf16.mxu0 0
    %1651 = vmatpush1.bf16.msra.mxu0 0
    %1652 = vmatprep.subr.bf16.mxu0 0
    %1653 = vmatpush1.bf16.msra.mxu0 0
    %1654 = vmatprep.mubr.bf16.mxu0 0
    %1655 = vmatmul.mubr.bf16.gmra.mrb[0].mxu0 %v960
    %v1656 = vpop.f32.mrb[0].mxu0
    %v1657 = vadd.f32 0.0, %v1656
    %v1658 = vpop.f32.mrb[0].mxu0
    %v1659 = vpop.f32.mrb[0].mxu0
    %v1660 = vpop.f32.mrb[0].mxu0
    %1661 = vdwg.mxu0
    %1662 = vmatprep.subr.bf16.mxu0 0
    %1663 = vmatpush1.bf16.msra.mxu0 %v1438
    %1664 = vmatprep.subr.bf16.mxu0 0
    %1665 = vmatpush1.bf16.msra.mxu0 %v1439
    %1666 = vmatprep.subr.bf16.mxu0 0
    %1667 = vmatpush1.bf16.msra.mxu0 %v1440
    %1668 = vmatprep.subr.bf16.mxu0 0
    %1669 = vmatpush1.bf16.msra.mxu0 %v1441
    %1670 = vmatprep.subr.bf16.mxu0 0
    %1671 = vmatpush1.bf16.msra.mxu0 %v1442
    %1672 = vmatprep.subr.bf16.mxu0 0
    %1673 = vmatpush1.bf16.msra.mxu0 %v1443
    %1674 = vmatprep.subr.bf16.mxu0 0
    %1675 = vmatpush1.bf16.msra.mxu0 %v1444
    %1676 = vmatprep.subr.bf16.mxu0 0
    %1677 = vmatpush1.bf16.msra.mxu0 %v1445
    %1678 = vmatprep.subr.bf16.mxu0 0
    %1679 = vmatpush1.bf16.msra.mxu0 0
    %1680 = vmatprep.subr.bf16.mxu0 0
    %1681 = vmatpush1.bf16.msra.mxu0 0
    %1682 = vmatprep.subr.bf16.mxu0 0
    %1683 = vmatpush1.bf16.msra.mxu0 0
    %1684 = vmatprep.subr.bf16.mxu0 0
    %1685 = vmatpush1.bf16.msra.mxu0 0
    %1686 = vmatprep.subr.bf16.mxu0 0
    %1687 = vmatpush1.bf16.msra.mxu0 0
    %1688 = vmatprep.subr.bf16.mxu0 0
    %1689 = vmatpush1.bf16.msra.mxu0 0
    %1690 = vmatprep.subr.bf16.mxu0 0
    %1691 = vmatpush1.bf16.msra.mxu0 0
    %1692 = vmatprep.subr.bf16.mxu0 0
    %1693 = vmatpush1.bf16.msra.mxu0 0
    %1694 = vmatprep.mubr.bf16.mxu0 0
    %1695 = vmatmul.mubr.bf16.gmra.mrb[0].mxu0 %v961
    %v1696 = vpop.f32.mrb[0].mxu0
    %v1697 = vadd.f32 0.0, %v1696
    %v1698 = vpop.f32.mrb[0].mxu0
    %v1699 = vpop.f32.mrb[0].mxu0
    %v1700 = vpop.f32.mrb[0].mxu0
    %1701 = vdwg.mxu0
    %1702 = vmatprep.subr.bf16.mxu0 0
    %1703 = vmatpush1.bf16.msra.mxu0 %v1446
    %1704 = vmatprep.subr.bf16.mxu0 0
    %1705 = vmatpush1.bf16.msra.mxu0 %v1447
    %1706 = vmatprep.subr.bf16.mxu0 0
    %1707 = vmatpush1.bf16.msra.mxu0 %v1448
    %1708 = vmatprep.subr.bf16.mxu0 0
    %1709 = vmatpush1.bf16.msra.mxu0 %v1449
    %1710 = vmatprep.subr.bf16.mxu0 0
    %1711 = vmatpush1.bf16.msra.mxu0 %v1450
    %1712 = vmatprep.subr.bf16.mxu0 0
    %1713 = vmatpush1.bf16.msra.mxu0 %v1451
    %1714 = vmatprep.subr.bf16.mxu0 0
    %1715 = vmatpush1.bf16.msra.mxu0 %v1452
    %1716 = vmatprep.subr.bf16.mxu0 0
    %1717 = vmatpush1.bf16.msra.mxu0 %v1453
    %1718 = vmatprep.subr.bf16.mxu0 0
    %1719 = vmatpush1.bf16.msra.mxu0 0
    %1720 = vmatprep.subr.bf16.mxu0 0
    %1721 = vmatpush1.bf16.msra.mxu0 0
    %1722 = vmatprep.subr.bf16.mxu0 0
    %1723 = vmatpush1.bf16.msra.mxu0 0
    %1724 = vmatprep.subr.bf16.mxu0 0
    %1725 = vmatpush1.bf16.msra.mxu0 0
    %1726 = vmatprep.subr.bf16.mxu0 0
    %1727 = vmatpush1.bf16.msra.mxu0 0
    %1728 = vmatprep.subr.bf16.mxu0 0
    %1729 = vmatpush1.bf16.msra.mxu0 0
    %1730 = vmatprep.subr.bf16.mxu0 0
    %1731 = vmatpush1.bf16.msra.mxu0 0
    %1732 = vmatprep.subr.bf16.mxu0 0
    %1733 = vmatpush1.bf16.msra.mxu0 0
    %1734 = vmatprep.mubr.bf16.mxu0 0
    %1735 = vmatmul.mubr.bf16.gmra.mrb[0].mxu0 %v962
    %v1736 = vpop.f32.mrb[0].mxu0
    %v1737 = vadd.f32 0.0, %v1736
    %v1738 = vpop.f32.mrb[0].mxu0
    %v1739 = vpop.f32.mrb[0].mxu0
    %v1740 = vpop.f32.mrb[0].mxu0
    %1741 = vdwg.mxu0
    %1742 = vmatprep.subr.bf16.mxu0 0
    %1743 = vmatpush1.bf16.msra.mxu0 %v1454
    %1744 = vmatprep.subr.bf16.mxu0 0
    %1745 = vmatpush1.bf16.msra.mxu0 %v1455
    %1746 = vmatprep.subr.bf16.mxu0 0
    %1747 = vmatpush1.bf16.msra.mxu0 %v1456
    %1748 = vmatprep.subr.bf16.mxu0 0
    %1749 = vmatpush1.bf16.msra.mxu0 %v1457
    %1750 = vmatprep.subr.bf16.mxu0 0
    %1751 = vmatpush1.bf16.msra.mxu0 %v1458
    %1752 = vmatprep.subr.bf16.mxu0 0
    %1753 = vmatpush1.bf16.msra.mxu0 %v1459
    %1754 = vmatprep.subr.bf16.mxu0 0
    %1755 = vmatpush1.bf16.msra.mxu0 %v1460
    %1756 = vmatprep.subr.bf16.mxu0 0
    %1757 = vmatpush1.bf16.msra.mxu0 %v1461
    %1758 = vmatprep.subr.bf16.mxu0 0
    %1759 = vmatpush1.bf16.msra.mxu0 0
    %1760 = vmatprep.subr.bf16.mxu0 0
    %1761 = vmatpush1.bf16.msra.mxu0 0
    %1762 = vmatprep.subr.bf16.mxu0 0
    %1763 = vmatpush1.bf16.msra.mxu0 0
    %1764 = vmatprep.subr.bf16.mxu0 0
    %1765 = vmatpush1.bf16.msra.mxu0 0
    %1766 = vmatprep.subr.bf16.mxu0 0
    %1767 = vmatpush1.bf16.msra.mxu0 0
    %1768 = vmatprep.subr.bf16.mxu0 0
    %1769 = vmatpush1.bf16.msra.mxu0 0
    %1770 = vmatprep.subr.bf16.mxu0 0
    %1771 = vmatpush1.bf16.msra.mxu0 0
    %1772 = vmatprep.subr.bf16.mxu0 0
    %1773 = vmatpush1.bf16.msra.mxu0 0
    %1774 = vmatprep.mubr.bf16.mxu0 0
    %1775 = vmatmul.mubr.bf16.gmra.mrb[0].mxu0 %v963
    %v1776 = vpop.f32.mrb[0].mxu0
    %v1777 = vadd.f32 0.0, %v1776
    %v1778 = vpop.f32.mrb[0].mxu0
    %v1779 = vpop.f32.mrb[0].mxu0
    %v1780 = vpop.f32.mrb[0].mxu0
    %1781 = vdwg.mxu0
    %v1782 = vld [vmem:[%s3] sm:$0x1]
    %v1784 = vlaneseq
    %v1785 = vshrl.u32 %v1784, 7
    %v1786 = vsub.s32 0, %v1785
    %v1787 = vrot.slane %v1782, %v1786
    %v1789 = vadd.f32 %v1497, %v1787
    %v1790 = vadd.f32 %v1537, %v1787
    %v1791 = vadd.f32 %v1577, %v1787
    %v1792 = vadd.f32 %v1617, %v1787
    %v1793 = vadd.f32 %v1657, %v1787
    %v1794 = vadd.f32 %v1697, %v1787
    %v1795 = vadd.f32 %v1737, %v1787
    %v1796 = vadd.f32 %v1777, %v1787
    %v1805 = vrot.slane %v1790, 7
    %v1806 = vsel %vm1374, %v1805, %v1789
    %v1807 = vrot.slane %v1791, 6
    %v1808 = vsel %vm1377, %v1807, %v1806
    %v1809 = vrot.slane %v1792, 5
    %v1810 = vsel %vm1380, %v1809, %v1808
    %v1811 = vrot.slane %v1793, 4
    %v1812 = vsel %vm1383, %v1811, %v1810
    %v1813 = vrot.slane %v1794, 3
    %v1814 = vsel %vm1386, %v1813, %v1812
    %v1815 = vrot.slane %v1795, 2
    %v1816 = vsel %vm1389, %v1815, %v1814
    %v1817 = vrot.slane %v1796, 1
    %v1818 = vsel %vm1392, %v1817, %v1816
    %1820 = vst [vmem:[#allocation8] sm:$0xff] %v1818
    // Predicated region
    $region34: #{hebby_rnn_forward.1} parent=1 // pred_check
      _
    $region35: #{hebby_rnn_forward.1} parent=1 // pred_check_branch
      %1822 = sbr.rel (0) target = $region37
    $region36: #{hebby_rnn_forward.1} parent=1 // pred_region
      %s1824 = ssub.s32 128, 128
      %1825 = vsyncadd [#allocation7], %s1824
      %s1827 = sshll.u32 [#allocation6], 4
      %s1828 = int_to_ptr.vmem [resolvable:$true] %s1827
      %1830 = dma.vmem_to_hbm [thread:$0]  %s1828, 128, %s7, [#allocation7]
    $region37: #{hebby_rnn_forward.1} parent=1 // pred_fallthru
      _
    // Predicated region
    $region38: #{hebby_rnn_forward.1} parent=1 // pred_check
      _
    $region39: #{hebby_rnn_forward.1} parent=1 // pred_check_branch
      %1832 = sbr.rel (0) target = $region41
    $region40: #{hebby_rnn_forward.1} parent=1 // pred_region
      %s1834 = ssub.s32 128, 128
      %1835 = vsyncadd [#allocation9], %s1834
      %s1837 = sshll.u32 [#allocation8], 4
      %s1838 = int_to_ptr.vmem [resolvable:$true] %s1837
      %1840 = dma.vmem_to_hbm [thread:$0]  %s1838, 128, %s8, [#allocation9]
    $region41: #{hebby_rnn_forward.1} parent=1 // pred_fallthru
      _
    // Predicated region
    $region42: #{hebby_rnn_forward.1} parent=1 // pred_check
      _
    $region43: #{hebby_rnn_forward.1} parent=1 // pred_check_branch
      %1842 = sbr.rel (0) target = $region45
    $region44: #{hebby_rnn_forward.1} parent=1 // pred_region
      %1843 = dma.done [#allocation7], 128
    $region45: #{hebby_rnn_forward.1} parent=1 // pred_fallthru
      _
    // Predicated region
    $region46: #{hebby_rnn_forward.1} parent=1 // pred_check
      _
    $region47: #{hebby_rnn_forward.1} parent=1 // pred_check_branch
      %1845 = sbr.rel (0) target = $region49
    $region48: #{hebby_rnn_forward.1} parent=1 // pred_region
      %1846 = dma.done [#allocation9], 128
    $region49: #{hebby_rnn_forward.1} parent=1 // pred_fallthru
      _
    %1847 = vsyncpa [#allocation7], 1
    %1848 = vsyncpa [#allocation9], 1
  %1849 = vsyncmov [#allocation5]
  %s1850 = vpop.sfrf %1849
  %p1851 = scmp.eq.s32.totalorder %s1850, 0
  %p1852 = pneg %p1851
  %1854 = shalt.err (%p1852)
  %s1855 = scalar_lea.sflag [#allocation5], 1
  %1856 = vsyncmov %s1855
  %s1857 = vpop.sfrf %1856
  %p1858 = scmp.eq.s32.totalorder %s1857, 0
  %p1859 = pneg %p1858
  %1861 = shalt.err (%p1859)
  %s1862 = scalar_lea.sflag [#allocation5], 2
  %1863 = vsyncmov %s1862
  %s1864 = vpop.sfrf %1863
  %p1865 = scmp.eq.s32.totalorder %s1864, 0
  %p1866 = pneg %p1865
  %1868 = shalt.err (%p1866)
  %s1869 = scalar_lea.sflag [#allocation5], 3
  %1870 = vsyncmov %s1869
  %s1871 = vpop.sfrf %1870
  %p1872 = scmp.eq.s32.totalorder %s1871, 0
  %p1873 = pneg %p1872
  %1875 = shalt.err (%p1873)

</llo_original>
